<compile_context>
chip_gen: v7x
topology: tpu7x:2x2x1
jax: 0.10.0
libtpu: 0.0.40
codegen_flags: <defaults>
</compile_context>

<pallas_src>
import functools

import jax
import jax.numpy as jnp
from jax import lax
from jax.experimental import pallas as pl
from jax.experimental.pallas import tpu as pltpu


def _round_up(x, m):
    return (x + m - 1) // m * m


def _doubleconv_kernel(x_ref, w1_ref, t1_ref, mask_ref, w2_ref, t2_ref,
                       out_ref, patch1_ref, mid_ref, patch2_ref,
                       *, B, Wp, L_mid_pad, L_out_pad, CinP, CmidP, slope,
                       tail):
    """Fused DoubleConv over a block of B images.

    x_ref    : (B, CinP, L_in)        bf16 flattened zero-padded images
    w1_ref   : (CmidP, 9*CinP)        bf16 folded-K conv1 weights (BN1 scale folded in)
    t1_ref   : (CmidP, 1)             f32 folded BN1 shift
    mask_ref : (1, B*L_mid_pad)       f32 interior mask (zeroes conv2's halo / junk lanes)
    w2_ref   : (Cout, 9*CmidP)        bf16 folded-K conv2 weights (BN2 scale folded in)
    t2_ref   : (Cout, 1)              f32 folded BN2 shift
    out_ref  : (B, Cout, L_out_pad)   f32 lane-dense flattened outputs
    patch1_ref / mid_ref / patch2_ref : bf16 VMEM scratch
    """
    # Zero the small tail after the last image's mid slab: conv2 halo reads
    # for the last image bleed up to 2*Wp+2 lanes past its slab (those reads
    # only feed junk output lanes, but must be in-bounds and finite).
    mid_ref[:, B * L_mid_pad:] = jnp.zeros((CmidP, tail), mid_ref.dtype)

    # ---- conv1: gather the 9 taps into the K axis (K = 9*CinP) ------------
    # Aligned 16-row (bf16 granule) slab writes, 128-multiple lane offsets.
    for b in range(B):
        for dy in range(3):
            for dx in range(3):
                t = dy * 3 + dx
                off = dy * Wp + dx
                patch1_ref[t * CinP:(t + 1) * CinP,
                           b * L_mid_pad:(b + 1) * L_mid_pad] = (
                               x_ref[b, :, off:off + L_mid_pad])

    conv1 = jnp.dot(w1_ref[...], patch1_ref[...],
                    preferred_element_type=jnp.float32)  # (CmidP, B*L_mid_pad)

    # BN shift (scale already folded into weights) + LeakyReLU, then zero the
    # conv2 halo / junk lanes via the precomputed mask.
    y1 = conv1 + t1_ref[...]
    y1 = jnp.maximum(y1, slope * y1)
    mid_ref[:, :B * L_mid_pad] = (y1 * mask_ref[...]).astype(mid_ref.dtype)

    # ---- conv2: same folded-K single matmul, halo read from mid_ref -------
    for b in range(B):
        for dy in range(3):
            for dx in range(3):
                t = dy * 3 + dx
                off = b * L_mid_pad + dy * Wp + dx
                patch2_ref[t * CmidP:(t + 1) * CmidP,
                           b * L_out_pad:(b + 1) * L_out_pad] = (
                               mid_ref[:, off:off + L_out_pad])

    conv2 = jnp.dot(w2_ref[...], patch2_ref[...],
                    preferred_element_type=jnp.float32)  # (Cout, B*L_out_pad)
    y2 = conv2 + t2_ref[...]
    y2 = jnp.maximum(y2, slope * y2)

    # Per-image lane-dense stores (L_out_pad is a multiple of 128).
    for b in range(B):
        out_ref[b] = y2[:, b * L_out_pad:(b + 1) * L_out_pad].astype(out_ref.dtype)


def double_conv_forward(x_nchw, w1, g1, b1, m1, v1, w2, g2, b2, m2, v2,
                        *, eps=1e-5, slope=0.1, block_n=None):
    """Pallas implementation of DoubleConv.forward. x_nchw: (N, Cin, H, W)."""
    N, Cin, H, W = x_nchw.shape
    Cmid = w1.shape[0]
    Cout = w2.shape[0]

    Wp = W + 4                               # width padded by 2 on each side
    CinP = _round_up(Cin, 16)                # bf16 sublane-packing granule
    CmidP = _round_up(Cmid, 16)
    L_mid = (H + 3) * Wp                     # conv1 output incl. conv2 halo + slack row
    L_out = H * Wp
    L_mid_pad = _round_up(L_mid, 128)        # lane-dense slab extents
    L_out_pad = _round_up(L_out, 128)
    tail = 128                               # scratch tail for last-image halo reads
    # Rows of padded input so the deepest tap read (offset 2*Wp+2, length
    # L_mid_pad) stays in bounds; content past the real halo is zero padding.
    rows_in = max(H + 4, -(-(2 * Wp + 2 + L_mid_pad) // Wp))
    L_in = rows_in * Wp

    # Batch block: widen the matmul lane axis per grid step (largest divisor
    # of N up to 8).  At these sizes scratch is tiny; when scaling up, size B
    # (or add a row-band axis) to the scoped VMEM default (16 MiB v5e,
    # 32 MiB v6e/v7x) or raise vmem_limit_bytes.
    if block_n is None:
        block_n = 1
        for d in range(1, min(N, 8) + 1):
            if N % d == 0:
                block_n = d
    B = block_n
    assert N % B == 0, (N, B)

    # ---- input: cast, pad channels to CinP and spatial halo, flatten ------
    xpad = jnp.pad(x_nchw.astype(jnp.bfloat16),
                   ((0, 0), (0, CinP - Cin), (2, rows_in - H - 2), (2, 2)))
    xflat = xpad.reshape(N, CinP, L_in)

    # ---- fold BatchNorm (eval mode / running stats) ------------------------
    # Scale goes into the conv weights (per output channel); shift stays as an
    # in-kernel add.  Weights: (Cout, 9*CinPad), tap-major / channel-minor,
    # with zero-padded channel columns matching the padded patch slabs.
    # TODO(synk): training-mode BatchNorm (batch statistics) is not implemented.
    inv1 = (g1 / jnp.sqrt(v1 + eps)).astype(jnp.float32)
    inv2 = (g2 / jnp.sqrt(v2 + eps)).astype(jnp.float32)

    w1s = w1.astype(jnp.float32) * inv1[:, None, None, None]
    w1t = jnp.transpose(w1s, (0, 2, 3, 1)).reshape(Cmid, 9, Cin)
    w1m = jnp.zeros((CmidP, 9, CinP), jnp.float32).at[:Cmid, :, :Cin].set(w1t)
    w1m = w1m.reshape(CmidP, 9 * CinP).astype(jnp.bfloat16)

    w2s = w2.astype(jnp.float32) * inv2[:, None, None, None]
    w2t = jnp.transpose(w2s, (0, 2, 3, 1)).reshape(Cout, 9, Cmid)
    w2m = jnp.zeros((Cout, 9, CmidP), jnp.float32).at[:, :, :Cmid].set(w2t)
    w2m = w2m.reshape(Cout, 9 * CmidP).astype(jnp.bfloat16)

    t1 = jnp.zeros((CmidP, 1), jnp.float32).at[:Cmid, 0].set(b1 - m1 * inv1)
    t2 = (b2 - m2 * inv2).astype(jnp.float32).reshape(Cout, 1)

    # mask = 1 on the valid activation interior of the flattened intermediate,
    # 0 on conv2's zero-halo / pad columns / slack + lane-pad positions.
    rows = jnp.arange(H + 3)
    cols = jnp.arange(Wp)
    mask2d = (((rows >= 1) & (rows <= H))[:, None]
              & ((cols >= 1) & (cols <= W))[None, :]).astype(jnp.float32)
    mask_img = jnp.pad(mask2d.reshape(1, L_mid),
                       ((0, 0), (0, L_mid_pad - L_mid)))
    mask = jnp.tile(mask_img, (1, B))                        # (1, B*L_mid_pad)

    kernel = functools.partial(
        _doubleconv_kernel, B=B, Wp=Wp, L_mid_pad=L_mid_pad,
        L_out_pad=L_out_pad, CinP=CinP, CmidP=CmidP, slope=slope, tail=tail)

    out_flat = pl.pallas_call(
        kernel,
        out_shape=jax.ShapeDtypeStruct((N, Cout, L_out_pad), jnp.float32),
        grid_spec=pltpu.PrefetchScalarGridSpec(
            num_scalar_prefetch=0,
            grid=(N // B,),
            in_specs=[
                pl.BlockSpec((B, CinP, L_in), lambda n: (n, 0, 0)),
                pl.BlockSpec((CmidP, 9 * CinP), lambda n: (0, 0)),
                pl.BlockSpec((CmidP, 1), lambda n: (0, 0)),
                pl.BlockSpec((1, B * L_mid_pad), lambda n: (0, 0)),
                pl.BlockSpec((Cout, 9 * CmidP), lambda n: (0, 0)),
                pl.BlockSpec((Cout, 1), lambda n: (0, 0)),
            ],
            out_specs=pl.BlockSpec((B, Cout, L_out_pad), lambda n: (n, 0, 0)),
            scratch_shapes=[
                pltpu.VMEM((9 * CinP, B * L_mid_pad), jnp.bfloat16),      # conv1 patches
                pltpu.VMEM((CmidP, B * L_mid_pad + tail), jnp.bfloat16),  # activation (+halo)
                pltpu.VMEM((9 * CmidP, B * L_out_pad), jnp.bfloat16),     # conv2 patches
            ],
        ),
        compiler_params=pltpu.CompilerParams(
            dimension_semantics=("parallel",)),
    )(xflat, w1m, t1, mask, w2m, t2)

    # (N, Cout, L_out_pad) -> (N, Cout, H, W): drop lane pad + right pad cols.
    return out_flat[:, :, :L_out].reshape(N, Cout, H, Wp)[:, :, :, :W]


def _reference(x, w1, g1, b1, m1, v1, w2, g2, b2, m2, v2, eps=1e-5, slope=0.1):
    """Pure-JAX f32 reference matching PyTorch semantics (NCHW / OIHW, eval BN)."""
    dn = ('NCHW', 'OIHW', 'NCHW')
    y = lax.conv_general_dilated(x, w1, (1, 1), ((1, 1), (1, 1)),
                                 dimension_numbers=dn)
    s1 = g1 / jnp.sqrt(v1 + eps)
    y = y * s1[None, :, None, None] + (b1 - m1 * s1)[None, :, None, None]
    y = jnp.where(y > 0, y, slope * y)
    z = lax.conv_general_dilated(y, w2, (1, 1), ((1, 1), (1, 1)),
                                 dimension_numbers=dn)
    s2 = g2 / jnp.sqrt(v2 + eps)
    z = z * s2[None, :, None, None] + (b2 - m2 * s2)[None, :, None, None]
    return jnp.where(z > 0, z, slope * z)


if __name__ == "__main__":
    # DoubleConv(in_channels=4, out_channels=8) -> mid_channels = 8
    N, Cin, Cout, H, W = 2, 4, 8, 16, 16
    Cmid = Cout
    key = jax.random.PRNGKey(0)
    ks = jax.random.split(key, 11)

    x = jax.random.normal(ks[0], (N, Cin, H, W), jnp.float32)

    # Conv weights (bias=False) and BatchNorm params in PyTorch layouts.
    w1 = 0.1 * jax.random.normal(ks[1], (Cmid, Cin, 3, 3), jnp.float32)
    g1 = 1.0 + 0.1 * jax.random.normal(ks[2], (Cmid,), jnp.float32)
    b1 = 0.1 * jax.random.normal(ks[3], (Cmid,), jnp.float32)
    m1 = 0.1 * jax.random.normal(ks[4], (Cmid,), jnp.float32)
    v1 = 0.5 + jax.random.uniform(ks[5], (Cmid,), jnp.float32)
    w2 = 0.1 * jax.random.normal(ks[6], (Cout, Cmid, 3, 3), jnp.float32)
    g2 = 1.0 + 0.1 * jax.random.normal(ks[7], (Cout,), jnp.float32)
    b2 = 0.1 * jax.random.normal(ks[8], (Cout,), jnp.float32)
    m2 = 0.1 * jax.random.normal(ks[9], (Cout,), jnp.float32)
    v2 = 0.5 + jax.random.uniform(ks[10], (Cout,), jnp.float32)

    out = jax.block_until_ready(
        double_conv_forward(x, w1, g1, b1, m1, v1, w2, g2, b2, m2, v2))
    ref = jax.block_until_ready(
        _reference(x, w1, g1, b1, m1, v1, w2, g2, b2, m2, v2))

    assert out.shape == (N, Cout, H, W), out.shape
    err = float(jnp.max(jnp.abs(out - ref)))
    # bf16 MXU inputs / BN-scale folded into bf16 weights (f32 accumulation)
    # -> intentional mixed-precision tradeoff vs the f32 reference.
    assert err < 5e-2, err
    print("KERNEL_OK")
</pallas_src>

<mosaic_0001>
module attributes {stable_mosaic.version = 11 : i64} {
  func.func @_doubleconv_kernel(%arg0: i32, %arg1: memref<2x16x440xbf16, #tpu.memory_space<vmem>>, %arg2: memref<16x144xbf16, #tpu.memory_space<vmem>>, %arg3: memref<16x1xf32, #tpu.memory_space<vmem>>, %arg4: memref<1x768xf32, #tpu.memory_space<vmem>>, %arg5: memref<8x144xbf16, #tpu.memory_space<vmem>>, %arg6: memref<8x1xf32, #tpu.memory_space<vmem>>, %arg7: memref<2x8x384xf32, #tpu.memory_space<vmem>>, %arg8: memref<144x768xbf16, #tpu.memory_space<vmem>>, %arg9: memref<16x896xbf16, #tpu.memory_space<vmem>>, %arg10: memref<144x768xbf16, #tpu.memory_space<vmem>>) attributes {dimension_semantics = [#tpu.dimension_semantics<parallel>], iteration_bounds = array<i64: 1>, scalar_prefetch = 0 : i64, scratch_operands = 3 : i64, tpu.core_type = #tpu.core_type<tc>, window_params = [{transform_indices = @transform_0, window_bounds = array<i64: 2, 16, 440>}, {pipeline_mode = #tpu.pipeline_mode<synchronous>, transform_indices = @transform_1, window_bounds = array<i64: 16, 144>}, {pipeline_mode = #tpu.pipeline_mode<synchronous>, transform_indices = @transform_2, window_bounds = array<i64: 16, 1>}, {pipeline_mode = #tpu.pipeline_mode<synchronous>, transform_indices = @transform_3, window_bounds = array<i64: 1, 768>}, {pipeline_mode = #tpu.pipeline_mode<synchronous>, transform_indices = @transform_4, window_bounds = array<i64: 8, 144>}, {pipeline_mode = #tpu.pipeline_mode<synchronous>, transform_indices = @transform_5, window_bounds = array<i64: 8, 1>}, {transform_indices = @transform_6, window_bounds = array<i64: 2, 8, 384>}]} {
    %cst = arith.constant 0.000000e+00 : bf16
    %0 = vector.broadcast %cst : bf16 to vector<16x128xbf16>
    %c0 = arith.constant 0 : index
    %c768 = arith.constant 768 : index
    %1 = vector.load %arg9[%c0, %c768] : memref<16x896xbf16, #tpu.memory_space<vmem>>, vector<16x128xbf16>
    tpu.vector_store %arg9[%c0, %c768], %0 {strides = array<i32>} : memref<16x896xbf16, #tpu.memory_space<vmem>>, vector<16x128xbf16>,
    %c0_0 = arith.constant 0 : index
    %c0_1 = arith.constant 0 : index
    %c0_2 = arith.constant 0 : index
    %2 = vector.load %arg1[%c0_0, %c0_1, %c0_2] : memref<2x16x440xbf16, #tpu.memory_space<vmem>>, vector<1x16x384xbf16>
    %3 = vector.shape_cast %2 : vector<1x16x384xbf16> to vector<16x384xbf16>
    %c0_3 = arith.constant 0 : index
    %c0_4 = arith.constant 0 : index
    %4 = vector.load %arg8[%c0_3, %c0_4] : memref<144x768xbf16, #tpu.memory_space<vmem>>, vector<16x384xbf16>
    tpu.vector_store %arg8[%c0_3, %c0_4], %3 {strides = array<i32>} : memref<144x768xbf16, #tpu.memory_space<vmem>>, vector<16x384xbf16>,
    %c0_5 = arith.constant 0 : index
    %c0_6 = arith.constant 0 : index
    %c1 = arith.constant 1 : index
    %5 = vector.load %arg1[%c0_5, %c0_6, %c1] : memref<2x16x440xbf16, #tpu.memory_space<vmem>>, vector<1x16x384xbf16>
    %6 = vector.shape_cast %5 : vector<1x16x384xbf16> to vector<16x384xbf16>
    %c16 = arith.constant 16 : index
    %c0_7 = arith.constant 0 : index
    %7 = vector.load %arg8[%c16, %c0_7] : memref<144x768xbf16, #tpu.memory_space<vmem>>, vector<16x384xbf16>
    tpu.vector_store %arg8[%c16, %c0_7], %6 {strides = array<i32>} : memref<144x768xbf16, #tpu.memory_space<vmem>>, vector<16x384xbf16>,
    %c0_8 = arith.constant 0 : index
    %c0_9 = arith.constant 0 : index
    %c2 = arith.constant 2 : index
    %8 = vector.load %arg1[%c0_8, %c0_9, %c2] : memref<2x16x440xbf16, #tpu.memory_space<vmem>>, vector<1x16x384xbf16>
    %9 = vector.shape_cast %8 : vector<1x16x384xbf16> to vector<16x384xbf16>
    %c32 = arith.constant 32 : index
    %c0_10 = arith.constant 0 : index
    %10 = vector.load %arg8[%c32, %c0_10] : memref<144x768xbf16, #tpu.memory_space<vmem>>, vector<16x384xbf16>
    tpu.vector_store %arg8[%c32, %c0_10], %9 {strides = array<i32>} : memref<144x768xbf16, #tpu.memory_space<vmem>>, vector<16x384xbf16>,
    %c0_11 = arith.constant 0 : index
    %c0_12 = arith.constant 0 : index
    %c20 = arith.constant 20 : index
    %11 = vector.load %arg1[%c0_11, %c0_12, %c20] : memref<2x16x440xbf16, #tpu.memory_space<vmem>>, vector<1x16x384xbf16>
    %12 = vector.shape_cast %11 : vector<1x16x384xbf16> to vector<16x384xbf16>
    %c48 = arith.constant 48 : index
    %c0_13 = arith.constant 0 : index
    %13 = vector.load %arg8[%c48, %c0_13] : memref<144x768xbf16, #tpu.memory_space<vmem>>, vector<16x384xbf16>
    tpu.vector_store %arg8[%c48, %c0_13], %12 {strides = array<i32>} : memref<144x768xbf16, #tpu.memory_space<vmem>>, vector<16x384xbf16>,
    %c0_14 = arith.constant 0 : index
    %c0_15 = arith.constant 0 : index
    %c21 = arith.constant 21 : index
    %14 = vector.load %arg1[%c0_14, %c0_15, %c21] : memref<2x16x440xbf16, #tpu.memory_space<vmem>>, vector<1x16x384xbf16>
    %15 = vector.shape_cast %14 : vector<1x16x384xbf16> to vector<16x384xbf16>
    %c64 = arith.constant 64 : index
    %c0_16 = arith.constant 0 : index
    %16 = vector.load %arg8[%c64, %c0_16] : memref<144x768xbf16, #tpu.memory_space<vmem>>, vector<16x384xbf16>
    tpu.vector_store %arg8[%c64, %c0_16], %15 {strides = array<i32>} : memref<144x768xbf16, #tpu.memory_space<vmem>>, vector<16x384xbf16>,
    %c0_17 = arith.constant 0 : index
    %c0_18 = arith.constant 0 : index
    %c22 = arith.constant 22 : index
    %17 = vector.load %arg1[%c0_17, %c0_18, %c22] : memref<2x16x440xbf16, #tpu.memory_space<vmem>>, vector<1x16x384xbf16>
    %18 = vector.shape_cast %17 : vector<1x16x384xbf16> to vector<16x384xbf16>
    %c80 = arith.constant 80 : index
    %c0_19 = arith.constant 0 : index
    %19 = vector.load %arg8[%c80, %c0_19] : memref<144x768xbf16, #tpu.memory_space<vmem>>, vector<16x384xbf16>
    tpu.vector_store %arg8[%c80, %c0_19], %18 {strides = array<i32>} : memref<144x768xbf16, #tpu.memory_space<vmem>>, vector<16x384xbf16>,
    %c0_20 = arith.constant 0 : index
    %c0_21 = arith.constant 0 : index
    %c40 = arith.constant 40 : index
    %20 = vector.load %arg1[%c0_20, %c0_21, %c40] : memref<2x16x440xbf16, #tpu.memory_space<vmem>>, vector<1x16x384xbf16>
    %21 = vector.shape_cast %20 : vector<1x16x384xbf16> to vector<16x384xbf16>
    %c96 = arith.constant 96 : index
    %c0_22 = arith.constant 0 : index
    %22 = vector.load %arg8[%c96, %c0_22] : memref<144x768xbf16, #tpu.memory_space<vmem>>, vector<16x384xbf16>
    tpu.vector_store %arg8[%c96, %c0_22], %21 {strides = array<i32>} : memref<144x768xbf16, #tpu.memory_space<vmem>>, vector<16x384xbf16>,
    %c0_23 = arith.constant 0 : index
    %c0_24 = arith.constant 0 : index
    %c41 = arith.constant 41 : index
    %23 = vector.load %arg1[%c0_23, %c0_24, %c41] : memref<2x16x440xbf16, #tpu.memory_space<vmem>>, vector<1x16x384xbf16>
    %24 = vector.shape_cast %23 : vector<1x16x384xbf16> to vector<16x384xbf16>
    %c112 = arith.constant 112 : index
    %c0_25 = arith.constant 0 : index
    %25 = vector.load %arg8[%c112, %c0_25] : memref<144x768xbf16, #tpu.memory_space<vmem>>, vector<16x384xbf16>
    tpu.vector_store %arg8[%c112, %c0_25], %24 {strides = array<i32>} : memref<144x768xbf16, #tpu.memory_space<vmem>>, vector<16x384xbf16>,
    %c0_26 = arith.constant 0 : index
    %c0_27 = arith.constant 0 : index
    %c42 = arith.constant 42 : index
    %26 = vector.load %arg1[%c0_26, %c0_27, %c42] : memref<2x16x440xbf16, #tpu.memory_space<vmem>>, vector<1x16x384xbf16>
    %27 = vector.shape_cast %26 : vector<1x16x384xbf16> to vector<16x384xbf16>
    %c128 = arith.constant 128 : index
    %c0_28 = arith.constant 0 : index
    %28 = vector.load %arg8[%c128, %c0_28] : memref<144x768xbf16, #tpu.memory_space<vmem>>, vector<16x384xbf16>
    tpu.vector_store %arg8[%c128, %c0_28], %27 {strides = array<i32>} : memref<144x768xbf16, #tpu.memory_space<vmem>>, vector<16x384xbf16>,
    %c1_29 = arith.constant 1 : index
    %c0_30 = arith.constant 0 : index
    %c0_31 = arith.constant 0 : index
    %29 = vector.load %arg1[%c1_29, %c0_30, %c0_31] : memref<2x16x440xbf16, #tpu.memory_space<vmem>>, vector<1x16x384xbf16>
    %30 = vector.shape_cast %29 : vector<1x16x384xbf16> to vector<16x384xbf16>
    %c0_32 = arith.constant 0 : index
    %c384 = arith.constant 384 : index
    %31 = vector.load %arg8[%c0_32, %c384] : memref<144x768xbf16, #tpu.memory_space<vmem>>, vector<16x384xbf16>
    tpu.vector_store %arg8[%c0_32, %c384], %30 {strides = array<i32>} : memref<144x768xbf16, #tpu.memory_space<vmem>>, vector<16x384xbf16>,
    %c1_33 = arith.constant 1 : index
    %c0_34 = arith.constant 0 : index
    %c1_35 = arith.constant 1 : index
    %32 = vector.load %arg1[%c1_33, %c0_34, %c1_35] : memref<2x16x440xbf16, #tpu.memory_space<vmem>>, vector<1x16x384xbf16>
    %33 = vector.shape_cast %32 : vector<1x16x384xbf16> to vector<16x384xbf16>
    %c16_36 = arith.constant 16 : index
    %c384_37 = arith.constant 384 : index
    %34 = vector.load %arg8[%c16_36, %c384_37] : memref<144x768xbf16, #tpu.memory_space<vmem>>, vector<16x384xbf16>
    tpu.vector_store %arg8[%c16_36, %c384_37], %33 {strides = array<i32>} : memref<144x768xbf16, #tpu.memory_space<vmem>>, vector<16x384xbf16>,
    %c1_38 = arith.constant 1 : index
    %c0_39 = arith.constant 0 : index
    %c2_40 = arith.constant 2 : index
    %35 = vector.load %arg1[%c1_38, %c0_39, %c2_40] : memref<2x16x440xbf16, #tpu.memory_space<vmem>>, vector<1x16x384xbf16>
    %36 = vector.shape_cast %35 : vector<1x16x384xbf16> to vector<16x384xbf16>
    %c32_41 = arith.constant 32 : index
    %c384_42 = arith.constant 384 : index
    %37 = vector.load %arg8[%c32_41, %c384_42] : memref<144x768xbf16, #tpu.memory_space<vmem>>, vector<16x384xbf16>
    tpu.vector_store %arg8[%c32_41, %c384_42], %36 {strides = array<i32>} : memref<144x768xbf16, #tpu.memory_space<vmem>>, vector<16x384xbf16>,
    %c1_43 = arith.constant 1 : index
    %c0_44 = arith.constant 0 : index
    %c20_45 = arith.constant 20 : index
    %38 = vector.load %arg1[%c1_43, %c0_44, %c20_45] : memref<2x16x440xbf16, #tpu.memory_space<vmem>>, vector<1x16x384xbf16>
    %39 = vector.shape_cast %38 : vector<1x16x384xbf16> to vector<16x384xbf16>
    %c48_46 = arith.constant 48 : index
    %c384_47 = arith.constant 384 : index
    %40 = vector.load %arg8[%c48_46, %c384_47] : memref<144x768xbf16, #tpu.memory_space<vmem>>, vector<16x384xbf16>
    tpu.vector_store %arg8[%c48_46, %c384_47], %39 {strides = array<i32>} : memref<144x768xbf16, #tpu.memory_space<vmem>>, vector<16x384xbf16>,
    %c1_48 = arith.constant 1 : index
    %c0_49 = arith.constant 0 : index
    %c21_50 = arith.constant 21 : index
    %41 = vector.load %arg1[%c1_48, %c0_49, %c21_50] : memref<2x16x440xbf16, #tpu.memory_space<vmem>>, vector<1x16x384xbf16>
    %42 = vector.shape_cast %41 : vector<1x16x384xbf16> to vector<16x384xbf16>
    %c64_51 = arith.constant 64 : index
    %c384_52 = arith.constant 384 : index
    %43 = vector.load %arg8[%c64_51, %c384_52] : memref<144x768xbf16, #tpu.memory_space<vmem>>, vector<16x384xbf16>
    tpu.vector_store %arg8[%c64_51, %c384_52], %42 {strides = array<i32>} : memref<144x768xbf16, #tpu.memory_space<vmem>>, vector<16x384xbf16>,
    %c1_53 = arith.constant 1 : index
    %c0_54 = arith.constant 0 : index
    %c22_55 = arith.constant 22 : index
    %44 = vector.load %arg1[%c1_53, %c0_54, %c22_55] : memref<2x16x440xbf16, #tpu.memory_space<vmem>>, vector<1x16x384xbf16>
    %45 = vector.shape_cast %44 : vector<1x16x384xbf16> to vector<16x384xbf16>
    %c80_56 = arith.constant 80 : index
    %c384_57 = arith.constant 384 : index
    %46 = vector.load %arg8[%c80_56, %c384_57] : memref<144x768xbf16, #tpu.memory_space<vmem>>, vector<16x384xbf16>
    tpu.vector_store %arg8[%c80_56, %c384_57], %45 {strides = array<i32>} : memref<144x768xbf16, #tpu.memory_space<vmem>>, vector<16x384xbf16>,
    %c1_58 = arith.constant 1 : index
    %c0_59 = arith.constant 0 : index
    %c40_60 = arith.constant 40 : index
    %47 = vector.load %arg1[%c1_58, %c0_59, %c40_60] : memref<2x16x440xbf16, #tpu.memory_space<vmem>>, vector<1x16x384xbf16>
    %48 = vector.shape_cast %47 : vector<1x16x384xbf16> to vector<16x384xbf16>
    %c96_61 = arith.constant 96 : index
    %c384_62 = arith.constant 384 : index
    %49 = vector.load %arg8[%c96_61, %c384_62] : memref<144x768xbf16, #tpu.memory_space<vmem>>, vector<16x384xbf16>
    tpu.vector_store %arg8[%c96_61, %c384_62], %48 {strides = array<i32>} : memref<144x768xbf16, #tpu.memory_space<vmem>>, vector<16x384xbf16>,
    %c1_63 = arith.constant 1 : index
    %c0_64 = arith.constant 0 : index
    %c41_65 = arith.constant 41 : index
    %50 = vector.load %arg1[%c1_63, %c0_64, %c41_65] : memref<2x16x440xbf16, #tpu.memory_space<vmem>>, vector<1x16x384xbf16>
    %51 = vector.shape_cast %50 : vector<1x16x384xbf16> to vector<16x384xbf16>
    %c112_66 = arith.constant 112 : index
    %c384_67 = arith.constant 384 : index
    %52 = vector.load %arg8[%c112_66, %c384_67] : memref<144x768xbf16, #tpu.memory_space<vmem>>, vector<16x384xbf16>
    tpu.vector_store %arg8[%c112_66, %c384_67], %51 {strides = array<i32>} : memref<144x768xbf16, #tpu.memory_space<vmem>>, vector<16x384xbf16>,
    %c1_68 = arith.constant 1 : index
    %c0_69 = arith.constant 0 : index
    %c42_70 = arith.constant 42 : index
    %53 = vector.load %arg1[%c1_68, %c0_69, %c42_70] : memref<2x16x440xbf16, #tpu.memory_space<vmem>>, vector<1x16x384xbf16>
    %54 = vector.shape_cast %53 : vector<1x16x384xbf16> to vector<16x384xbf16>
    %c128_71 = arith.constant 128 : index
    %c384_72 = arith.constant 384 : index
    %55 = vector.load %arg8[%c128_71, %c384_72] : memref<144x768xbf16, #tpu.memory_space<vmem>>, vector<16x384xbf16>
    tpu.vector_store %arg8[%c128_71, %c384_72], %54 {strides = array<i32>} : memref<144x768xbf16, #tpu.memory_space<vmem>>, vector<16x384xbf16>,
    %c0_73 = arith.constant 0 : index
    %c0_74 = arith.constant 0 : index
    %56 = vector.load %arg2[%c0_73, %c0_74] : memref<16x144xbf16, #tpu.memory_space<vmem>>, vector<16x144xbf16>
    %c0_75 = arith.constant 0 : index
    %c0_76 = arith.constant 0 : index
    %57 = vector.load %arg8[%c0_75, %c0_76] : memref<144x768xbf16, #tpu.memory_space<vmem>>, vector<144x768xbf16>
    %cst_77 = arith.constant dense<0.000000e+00> : vector<16x768xf32>
    %58 = tpu.matmul %56, %57, %cst_77 {dimension_numbers = #tpu.dot_dimension_numbers<[1], [0], [0], [1], [0, 0, 1, 1], [], []>} : vector<16x144xbf16>, vector<144x768xbf16>, vector<16x768xf32> -> vector<16x768xf32>
    %c0_78 = arith.constant 0 : index
    %c0_79 = arith.constant 0 : index
    %59 = vector.load %arg3[%c0_78, %c0_79] : memref<16x1xf32, #tpu.memory_space<vmem>>, vector<16x1xf32>
    %60 = vector.broadcast %59 : vector<16x1xf32> to vector<16x768xf32>
    %61 = arith.addf %58, %60 : vector<16x768xf32>
    %cst_80 = arith.constant 1.000000e-01 : f32
    %62 = vector.broadcast %cst_80 : f32 to vector<16x768xf32>
    %63 = arith.mulf %62, %61 : vector<16x768xf32>
    %64 = arith.maximumf %61, %63 : vector<16x768xf32>
    %c0_81 = arith.constant 0 : index
    %c0_82 = arith.constant 0 : index
    %65 = vector.load %arg4[%c0_81, %c0_82] : memref<1x768xf32, #tpu.memory_space<vmem>>, vector<1x768xf32>
    %66 = vector.broadcast %65 : vector<1x768xf32> to vector<16x768xf32>
    %67 = arith.mulf %64, %66 : vector<16x768xf32>
    %68 = arith.truncf %67 : vector<16x768xf32> to vector<16x768xbf16>
    %c0_83 = arith.constant 0 : index
    %c0_84 = arith.constant 0 : index
    %69 = vector.load %arg9[%c0_83, %c0_84] : memref<16x896xbf16, #tpu.memory_space<vmem>>, vector<16x768xbf16>
    tpu.vector_store %arg9[%c0_83, %c0_84], %68 {strides = array<i32>} : memref<16x896xbf16, #tpu.memory_space<vmem>>, vector<16x768xbf16>,
    %c0_85 = arith.constant 0 : index
    %c0_86 = arith.constant 0 : index
    %70 = vector.load %arg9[%c0_85, %c0_86] : memref<16x896xbf16, #tpu.memory_space<vmem>>, vector<16x384xbf16>
    %c0_87 = arith.constant 0 : index
    %c0_88 = arith.constant 0 : index
    %71 = vector.load %arg10[%c0_87, %c0_88] : memref<144x768xbf16, #tpu.memory_space<vmem>>, vector<16x384xbf16>
    tpu.vector_store %arg10[%c0_87, %c0_88], %70 {strides = array<i32>} : memref<144x768xbf16, #tpu.memory_space<vmem>>, vector<16x384xbf16>,
    %c0_89 = arith.constant 0 : index
    %c1_90 = arith.constant 1 : index
    %72 = vector.load %arg9[%c0_89, %c1_90] : memref<16x896xbf16, #tpu.memory_space<vmem>>, vector<16x384xbf16>
    %c16_91 = arith.constant 16 : index
    %c0_92 = arith.constant 0 : index
    %73 = vector.load %arg10[%c16_91, %c0_92] : memref<144x768xbf16, #tpu.memory_space<vmem>>, vector<16x384xbf16>
    tpu.vector_store %arg10[%c16_91, %c0_92], %72 {strides = array<i32>} : memref<144x768xbf16, #tpu.memory_space<vmem>>, vector<16x384xbf16>,
    %c0_93 = arith.constant 0 : index
    %c2_94 = arith.constant 2 : index
    %74 = vector.load %arg9[%c0_93, %c2_94] : memref<16x896xbf16, #tpu.memory_space<vmem>>, vector<16x384xbf16>
    %c32_95 = arith.constant 32 : index
    %c0_96 = arith.constant 0 : index
    %75 = vector.load %arg10[%c32_95, %c0_96] : memref<144x768xbf16, #tpu.memory_space<vmem>>, vector<16x384xbf16>
    tpu.vector_store %arg10[%c32_95, %c0_96], %74 {strides = array<i32>} : memref<144x768xbf16, #tpu.memory_space<vmem>>, vector<16x384xbf16>,
    %c0_97 = arith.constant 0 : index
    %c20_98 = arith.constant 20 : index
    %76 = vector.load %arg9[%c0_97, %c20_98] : memref<16x896xbf16, #tpu.memory_space<vmem>>, vector<16x384xbf16>
    %c48_99 = arith.constant 48 : index
    %c0_100 = arith.constant 0 : index
    %77 = vector.load %arg10[%c48_99, %c0_100] : memref<144x768xbf16, #tpu.memory_space<vmem>>, vector<16x384xbf16>
    tpu.vector_store %arg10[%c48_99, %c0_100], %76 {strides = array<i32>} : memref<144x768xbf16, #tpu.memory_space<vmem>>, vector<16x384xbf16>,
    %c0_101 = arith.constant 0 : index
    %c21_102 = arith.constant 21 : index
    %78 = vector.load %arg9[%c0_101, %c21_102] : memref<16x896xbf16, #tpu.memory_space<vmem>>, vector<16x384xbf16>
    %c64_103 = arith.constant 64 : index
    %c0_104 = arith.constant 0 : index
    %79 = vector.load %arg10[%c64_103, %c0_104] : memref<144x768xbf16, #tpu.memory_space<vmem>>, vector<16x384xbf16>
    tpu.vector_store %arg10[%c64_103, %c0_104], %78 {strides = array<i32>} : memref<144x768xbf16, #tpu.memory_space<vmem>>, vector<16x384xbf16>,
    %c0_105 = arith.constant 0 : index
    %c22_106 = arith.constant 22 : index
    %80 = vector.load %arg9[%c0_105, %c22_106] : memref<16x896xbf16, #tpu.memory_space<vmem>>, vector<16x384xbf16>
    %c80_107 = arith.constant 80 : index
    %c0_108 = arith.constant 0 : index
    %81 = vector.load %arg10[%c80_107, %c0_108] : memref<144x768xbf16, #tpu.memory_space<vmem>>, vector<16x384xbf16>
    tpu.vector_store %arg10[%c80_107, %c0_108], %80 {strides = array<i32>} : memref<144x768xbf16, #tpu.memory_space<vmem>>, vector<16x384xbf16>,
    %c0_109 = arith.constant 0 : index
    %c40_110 = arith.constant 40 : index
    %82 = vector.load %arg9[%c0_109, %c40_110] : memref<16x896xbf16, #tpu.memory_space<vmem>>, vector<16x384xbf16>
    %c96_111 = arith.constant 96 : index
    %c0_112 = arith.constant 0 : index
    %83 = vector.load %arg10[%c96_111, %c0_112] : memref<144x768xbf16, #tpu.memory_space<vmem>>, vector<16x384xbf16>
    tpu.vector_store %arg10[%c96_111, %c0_112], %82 {strides = array<i32>} : memref<144x768xbf16, #tpu.memory_space<vmem>>, vector<16x384xbf16>,
    %c0_113 = arith.constant 0 : index
    %c41_114 = arith.constant 41 : index
    %84 = vector.load %arg9[%c0_113, %c41_114] : memref<16x896xbf16, #tpu.memory_space<vmem>>, vector<16x384xbf16>
    %c112_115 = arith.constant 112 : index
    %c0_116 = arith.constant 0 : index
    %85 = vector.load %arg10[%c112_115, %c0_116] : memref<144x768xbf16, #tpu.memory_space<vmem>>, vector<16x384xbf16>
    tpu.vector_store %arg10[%c112_115, %c0_116], %84 {strides = array<i32>} : memref<144x768xbf16, #tpu.memory_space<vmem>>, vector<16x384xbf16>,
    %c0_117 = arith.constant 0 : index
    %c42_118 = arith.constant 42 : index
    %86 = vector.load %arg9[%c0_117, %c42_118] : memref<16x896xbf16, #tpu.memory_space<vmem>>, vector<16x384xbf16>
    %c128_119 = arith.constant 128 : index
    %c0_120 = arith.constant 0 : index
    %87 = vector.load %arg10[%c128_119, %c0_120] : memref<144x768xbf16, #tpu.memory_space<vmem>>, vector<16x384xbf16>
    tpu.vector_store %arg10[%c128_119, %c0_120], %86 {strides = array<i32>} : memref<144x768xbf16, #tpu.memory_space<vmem>>, vector<16x384xbf16>,
    %c0_121 = arith.constant 0 : index
    %c384_122 = arith.constant 384 : index
    %88 = vector.load %arg9[%c0_121, %c384_122] : memref<16x896xbf16, #tpu.memory_space<vmem>>, vector<16x384xbf16>
    %c0_123 = arith.constant 0 : index
    %c384_124 = arith.constant 384 : index
    %89 = vector.load %arg10[%c0_123, %c384_124] : memref<144x768xbf16, #tpu.memory_space<vmem>>, vector<16x384xbf16>
    tpu.vector_store %arg10[%c0_123, %c384_124], %88 {strides = array<i32>} : memref<144x768xbf16, #tpu.memory_space<vmem>>, vector<16x384xbf16>,
    %c0_125 = arith.constant 0 : index
    %c385 = arith.constant 385 : index
    %90 = vector.load %arg9[%c0_125, %c385] : memref<16x896xbf16, #tpu.memory_space<vmem>>, vector<16x384xbf16>
    %c16_126 = arith.constant 16 : index
    %c384_127 = arith.constant 384 : index
    %91 = vector.load %arg10[%c16_126, %c384_127] : memref<144x768xbf16, #tpu.memory_space<vmem>>, vector<16x384xbf16>
    tpu.vector_store %arg10[%c16_126, %c384_127], %90 {strides = array<i32>} : memref<144x768xbf16, #tpu.memory_space<vmem>>, vector<16x384xbf16>,
    %c0_128 = arith.constant 0 : index
    %c386 = arith.constant 386 : index
    %92 = vector.load %arg9[%c0_128, %c386] : memref<16x896xbf16, #tpu.memory_space<vmem>>, vector<16x384xbf16>
    %c32_129 = arith.constant 32 : index
    %c384_130 = arith.constant 384 : index
    %93 = vector.load %arg10[%c32_129, %c384_130] : memref<144x768xbf16, #tpu.memory_space<vmem>>, vector<16x384xbf16>
    tpu.vector_store %arg10[%c32_129, %c384_130], %92 {strides = array<i32>} : memref<144x768xbf16, #tpu.memory_space<vmem>>, vector<16x384xbf16>,
    %c0_131 = arith.constant 0 : index
    %c404 = arith.constant 404 : index
    %94 = vector.load %arg9[%c0_131, %c404] : memref<16x896xbf16, #tpu.memory_space<vmem>>, vector<16x384xbf16>
    %c48_132 = arith.constant 48 : index
    %c384_133 = arith.constant 384 : index
    %95 = vector.load %arg10[%c48_132, %c384_133] : memref<144x768xbf16, #tpu.memory_space<vmem>>, vector<16x384xbf16>
    tpu.vector_store %arg10[%c48_132, %c384_133], %94 {strides = array<i32>} : memref<144x768xbf16, #tpu.memory_space<vmem>>, vector<16x384xbf16>,
    %c0_134 = arith.constant 0 : index
    %c405 = arith.constant 405 : index
    %96 = vector.load %arg9[%c0_134, %c405] : memref<16x896xbf16, #tpu.memory_space<vmem>>, vector<16x384xbf16>
    %c64_135 = arith.constant 64 : index
    %c384_136 = arith.constant 384 : index
    %97 = vector.load %arg10[%c64_135, %c384_136] : memref<144x768xbf16, #tpu.memory_space<vmem>>, vector<16x384xbf16>
    tpu.vector_store %arg10[%c64_135, %c384_136], %96 {strides = array<i32>} : memref<144x768xbf16, #tpu.memory_space<vmem>>, vector<16x384xbf16>,
    %c0_137 = arith.constant 0 : index
    %c406 = arith.constant 406 : index
    %98 = vector.load %arg9[%c0_137, %c406] : memref<16x896xbf16, #tpu.memory_space<vmem>>, vector<16x384xbf16>
    %c80_138 = arith.constant 80 : index
    %c384_139 = arith.constant 384 : index
    %99 = vector.load %arg10[%c80_138, %c384_139] : memref<144x768xbf16, #tpu.memory_space<vmem>>, vector<16x384xbf16>
    tpu.vector_store %arg10[%c80_138, %c384_139], %98 {strides = array<i32>} : memref<144x768xbf16, #tpu.memory_space<vmem>>, vector<16x384xbf16>,
    %c0_140 = arith.constant 0 : index
    %c424 = arith.constant 424 : index
    %100 = vector.load %arg9[%c0_140, %c424] : memref<16x896xbf16, #tpu.memory_space<vmem>>, vector<16x384xbf16>
    %c96_141 = arith.constant 96 : index
    %c384_142 = arith.constant 384 : index
    %101 = vector.load %arg10[%c96_141, %c384_142] : memref<144x768xbf16, #tpu.memory_space<vmem>>, vector<16x384xbf16>
    tpu.vector_store %arg10[%c96_141, %c384_142], %100 {strides = array<i32>} : memref<144x768xbf16, #tpu.memory_space<vmem>>, vector<16x384xbf16>,
    %c0_143 = arith.constant 0 : index
    %c425 = arith.constant 425 : index
    %102 = vector.load %arg9[%c0_143, %c425] : memref<16x896xbf16, #tpu.memory_space<vmem>>, vector<16x384xbf16>
    %c112_144 = arith.constant 112 : index
    %c384_145 = arith.constant 384 : index
    %103 = vector.load %arg10[%c112_144, %c384_145] : memref<144x768xbf16, #tpu.memory_space<vmem>>, vector<16x384xbf16>
    tpu.vector_store %arg10[%c112_144, %c384_145], %102 {strides = array<i32>} : memref<144x768xbf16, #tpu.memory_space<vmem>>, vector<16x384xbf16>,
    %c0_146 = arith.constant 0 : index
    %c426 = arith.constant 426 : index
    %104 = vector.load %arg9[%c0_146, %c426] : memref<16x896xbf16, #tpu.memory_space<vmem>>, vector<16x384xbf16>
    %c128_147 = arith.constant 128 : index
    %c384_148 = arith.constant 384 : index
    %105 = vector.load %arg10[%c128_147, %c384_148] : memref<144x768xbf16, #tpu.memory_space<vmem>>, vector<16x384xbf16>
    tpu.vector_store %arg10[%c128_147, %c384_148], %104 {strides = array<i32>} : memref<144x768xbf16, #tpu.memory_space<vmem>>, vector<16x384xbf16>,
    %c0_149 = arith.constant 0 : index
    %c0_150 = arith.constant 0 : index
    %106 = vector.load %arg5[%c0_149, %c0_150] : memref<8x144xbf16, #tpu.memory_space<vmem>>, vector<8x144xbf16>
    %c0_151 = arith.constant 0 : index
    %c0_152 = arith.constant 0 : index
    %107 = vector.load %arg10[%c0_151, %c0_152] : memref<144x768xbf16, #tpu.memory_space<vmem>>, vector<144x768xbf16>
    %cst_153 = arith.constant dense<0.000000e+00> : vector<8x768xf32>
    %108 = tpu.matmul %106, %107, %cst_153 {dimension_numbers = #tpu.dot_dimension_numbers<[1], [0], [0], [1], [0, 0, 1, 1], [], []>} : vector<8x144xbf16>, vector<144x768xbf16>, vector<8x768xf32> -> vector<8x768xf32>
    %c0_154 = arith.constant 0 : index
    %c0_155 = arith.constant 0 : index
    %109 = vector.load %arg6[%c0_154, %c0_155] : memref<8x1xf32, #tpu.memory_space<vmem>>, vector<8x1xf32>
    %110 = vector.broadcast %109 : vector<8x1xf32> to vector<8x768xf32>
    %111 = arith.addf %108, %110 : vector<8x768xf32>
    %cst_156 = arith.constant 1.000000e-01 : f32
    %112 = vector.broadcast %cst_156 : f32 to vector<8x768xf32>
    %113 = arith.mulf %112, %111 : vector<8x768xf32>
    %114 = arith.maximumf %111, %113 : vector<8x768xf32>
    %115 = vector.extract_strided_slice %114 {offsets = [0, 0], sizes = [8, 384], strides = [1, 1]} : vector<8x768xf32> to vector<8x384xf32>
    %c0_157 = arith.constant 0 : index
    %c0_158 = arith.constant 0 : index
    %c0_159 = arith.constant 0 : index
    %116 = vector.load %arg7[%c0_157, %c0_158, %c0_159] : memref<2x8x384xf32, #tpu.memory_space<vmem>>, vector<1x8x384xf32>
    %117 = vector.shape_cast %116 : vector<1x8x384xf32> to vector<8x384xf32>
    %118 = vector.shape_cast %115 : vector<8x384xf32> to vector<1x8x384xf32>
    tpu.vector_store %arg7[%c0_157, %c0_158, %c0_159], %118 {strides = array<i32>} : memref<2x8x384xf32, #tpu.memory_space<vmem>>, vector<1x8x384xf32>,
    %119 = vector.extract_strided_slice %114 {offsets = [0, 384], sizes = [8, 384], strides = [1, 1]} : vector<8x768xf32> to vector<8x384xf32>
    %c1_160 = arith.constant 1 : index
    %c0_161 = arith.constant 0 : index
    %c0_162 = arith.constant 0 : index
    %120 = vector.load %arg7[%c1_160, %c0_161, %c0_162] : memref<2x8x384xf32, #tpu.memory_space<vmem>>, vector<1x8x384xf32>
    %121 = vector.shape_cast %120 : vector<1x8x384xf32> to vector<8x384xf32>
    %122 = vector.shape_cast %119 : vector<8x384xf32> to vector<1x8x384xf32>
    tpu.vector_store %arg7[%c1_160, %c0_161, %c0_162], %122 {strides = array<i32>} : memref<2x8x384xf32, #tpu.memory_space<vmem>>, vector<1x8x384xf32>,
    return
  }
  func.func @transform_0(%arg0: i32) -> (i32, i32, i32) {
    %c0_i32 = arith.constant 0 : i32
    %c0_i32_0 = arith.constant 0 : i32
    %c0_i32_1 = arith.constant 0 : i32
    return %arg0, %c0_i32, %c0_i32_0 : i32, i32, i32
  }
  func.func @transform_1(%arg0: i32) -> (i32, i32) {
    %c0_i32 = arith.constant 0 : i32
    %c0_i32_0 = arith.constant 0 : i32
    %c0_i32_1 = arith.constant 0 : i32
    return %c0_i32, %c0_i32_0 : i32, i32
  }
  func.func @transform_2(%arg0: i32) -> (i32, i32) {
    %c0_i32 = arith.constant 0 : i32
    %c0_i32_0 = arith.constant 0 : i32
    %c0_i32_1 = arith.constant 0 : i32
    return %c0_i32, %c0_i32_0 : i32, i32
  }
  func.func @transform_3(%arg0: i32) -> (i32, i32) {
    %c0_i32 = arith.constant 0 : i32
    %c0_i32_0 = arith.constant 0 : i32
    %c0_i32_1 = arith.constant 0 : i32
    return %c0_i32, %c0_i32_0 : i32, i32
  }
  func.func @transform_4(%arg0: i32) -> (i32, i32) {
    %c0_i32 = arith.constant 0 : i32
    %c0_i32_0 = arith.constant 0 : i32
    %c0_i32_1 = arith.constant 0 : i32
    return %c0_i32, %c0_i32_0 : i32, i32
  }
  func.func @transform_5(%arg0: i32) -> (i32, i32) {
    %c0_i32 = arith.constant 0 : i32
    %c0_i32_0 = arith.constant 0 : i32
    %c0_i32_1 = arith.constant 0 : i32
    return %c0_i32, %c0_i32_0 : i32, i32
  }
  func.func @transform_6(%arg0: i32) -> (i32, i32, i32) {
    %c0_i32 = arith.constant 0 : i32
    %c0_i32_0 = arith.constant 0 : i32
    %c0_i32_1 = arith.constant 0 : i32
    return %arg0, %c0_i32, %c0_i32_0 : i32, i32, i32
  }
}

</mosaic_0001>

<llo_original>
// kernel: tpu_custom_call.1
$region0: #{tpu_custom_call.1}
  #allocation0 [shape = 'u32[]', space=smem, size = 0x4, offset = 0x4, fixed_abs, tag = 'smem constant byte address 0x4 - core index']
  #allocation1 [shape = 'u32[144,128]{1,0:T(1,128)}', space=vmem, size = 0x12000, scoped, tag = 'internal scratch']
  #allocation2 [shape = 'bf16[144,768]{1,0:T(16,128)(2,1)}', space=vmem, size = 0x36000, scoped, tag = 'scratch operand']
  #allocation3 [shape = 'bf16[16,896]{1,0:T(16,128)(2,1)}', space=vmem, size = 0x7000, scoped, tag = 'scratch operand']
  #allocation4 [shape = 'bf16[144,768]{1,0:T(16,128)(2,1)}', space=vmem, size = 0x36000, scoped, tag = 'scratch operand']
  %s0 = inlined_call_operand.hbm [shape: bf16[2,16,440], index: 0, kind: input, shape index: {}]
  %s1 = inlined_call_operand.vmem [shape: bf16[16,144], index: 1, kind: input, shape index: {}]
  %s2 = inlined_call_operand.vmem [shape: f32[16,1], index: 2, kind: input, shape index: {}]
  %s3 = inlined_call_operand.vmem [shape: f32[1,768], index: 3, kind: input, shape index: {}]
  %s4 = inlined_call_operand.vmem [shape: bf16[8,144], index: 4, kind: input, shape index: {}]
  %s5 = inlined_call_operand.vmem [shape: f32[8,1], index: 5, kind: input, shape index: {}]
  %s6 = inlined_call_operand.hbm [shape: f32[2,8,384], index: 6, kind: output, shape index: {}]
  %s7 = sld [smem:[#allocation0]]
  $region38: #{tpu_custom_call.1} parent=0
    _
  %s9 = ssub.s32 1, %s7
  %s10 = scalar_select 0, %s9, %s7
  $region1: #{tpu_custom_call.1} parent=0
    #allocation5 [shape = 'u8[32768]{0}', space=vmem, size = 0x8000, scoped, tag = 'input window, operand 0, single buffered']
    #allocation6 [shape = 's32[1]{0}', space=sflag, size = 0x4, scoped, tag = 'scoped memory for tpu_custom_call.1']
    #allocation7 [shape = 's32[1]{0}', space=sflag, size = 0x4, scoped, tag = 'scoped memory for tpu_custom_call.1']
    #allocation8 [shape = 'u8[24576]{0}', space=vmem, size = 0x6000, scoped, tag = 'output window, operand 0, single buffered']
    %11 = vsyncpa [#allocation6], 0
    %12 = vsyncpa [#allocation7], 0
    // Predicated region
    $region2: #{tpu_custom_call.1} parent=1 // pred_check
      _
    $region3: #{tpu_custom_call.1} parent=1 // pred_check_branch
      %14 = sbr.rel (0) target = $region5
    $region4: #{tpu_custom_call.1} parent=1 // pred_region
      %s16 = ssub.s32 1024, 1024
      %17 = vsyncadd [#allocation6], %s16
      %s18 = sshll.u32 [#allocation5], 4
      %s19 = int_to_ptr.vmem [resolvable:$true] %s18
      %24 = dma.hbm_to_vmem [thread:$0]  %s0, 1024, %s19, [#allocation6], 256, 256, 16
    $region5: #{tpu_custom_call.1} parent=1 // pred_fallthru
      _
    // Predicated region
    $region6: #{tpu_custom_call.1} parent=1 // pred_check
      _
    $region7: #{tpu_custom_call.1} parent=1 // pred_check_branch
      %26 = sbr.rel (0) target = $region9
    $region8: #{tpu_custom_call.1} parent=1 // pred_region
      _
    $region9: #{tpu_custom_call.1} parent=1 // pred_fallthru
      _
    // Predicated region
    $region10: #{tpu_custom_call.1} parent=1 // pred_check
      _
    $region11: #{tpu_custom_call.1} parent=1 // pred_check_branch
      %28 = sbr.rel (0) target = $region13
    $region12: #{tpu_custom_call.1} parent=1 // pred_region
      _
    $region13: #{tpu_custom_call.1} parent=1 // pred_fallthru
      _
    // Predicated region
    $region14: #{tpu_custom_call.1} parent=1 // pred_check
      _
    $region15: #{tpu_custom_call.1} parent=1 // pred_check_branch
      %30 = sbr.rel (0) target = $region17
    $region16: #{tpu_custom_call.1} parent=1 // pred_region
      _
    $region17: #{tpu_custom_call.1} parent=1 // pred_fallthru
      _
    // Predicated region
    $region18: #{tpu_custom_call.1} parent=1 // pred_check
      _
    $region19: #{tpu_custom_call.1} parent=1 // pred_check_branch
      %32 = sbr.rel (0) target = $region21
    $region20: #{tpu_custom_call.1} parent=1 // pred_region
      _
    $region21: #{tpu_custom_call.1} parent=1 // pred_fallthru
      _
    // Predicated region
    $region22: #{tpu_custom_call.1} parent=1 // pred_check
      _
    $region23: #{tpu_custom_call.1} parent=1 // pred_check_branch
      %34 = sbr.rel (0) target = $region25
    $region24: #{tpu_custom_call.1} parent=1 // pred_region
      _
    $region25: #{tpu_custom_call.1} parent=1 // pred_fallthru
      _
    // Predicated region
    $region26: #{tpu_custom_call.1} parent=1 // pred_check
      _
    $region27: #{tpu_custom_call.1} parent=1 // pred_check_branch
      %36 = sbr.rel (0) target = $region29
    $region28: #{tpu_custom_call.1} parent=1 // pred_region
      %37 = dma.done [#allocation6], 1024
    $region29: #{tpu_custom_call.1} parent=1 // pred_fallthru
      _
    %39 = vst [vmem:[#allocation3 + $0x30] sm:$0xff] 0
    %v40 = vld [vmem:[#allocation5] sm:$0xff]
    %v41 = vld [vmem:[#allocation5 + $0x8] sm:$0xf]
    %v42 = vld [vmem:[#allocation5 + $0x10] sm:$0xff]
    %v43 = vld [vmem:[#allocation5 + $0x18] sm:$0xf]
    %v48 = vunpack.c.l.b16 %v40
    %v49 = vunpack.c.h.b16 %v40
    %v50 = vunpack.c.l.b16 %v41
    %v51 = vunpack.c.l.b16 %v42
    %v52 = vunpack.c.h.b16 %v42
    %v53 = vunpack.c.l.b16 %v43
    %v54 = vpack.c.b16 %v51, %v48
    %v55 = vpack.c.b16 %v52, %v49
    %v56 = vpack.c.b16 %v53, %v50
    %60 = vst [vmem:[#allocation2] sm:$0xff] %v54
    %61 = vst [vmem:[#allocation2 + $0x8] sm:$0xff] %v55
    %62 = vst [vmem:[#allocation2 + $0x10] sm:$0xff] %v56
    %v63 = vld [vmem:[#allocation5] sm:$0xff]
    %v64 = vld [vmem:[#allocation5 + $0x8] sm:$0xff]
    %v65 = vld [vmem:[#allocation5 + $0x10] sm:$0xff]
    %v66 = vld [vmem:[#allocation5 + $0x18] sm:$0xff]
    %v71 = vunpack.c.l.b16 %v63
    %v72 = vunpack.c.h.b16 %v63
    %v73 = vunpack.c.l.b16 %v64
    %v74 = vunpack.c.h.b16 %v64
    %v75 = vunpack.c.l.b16 %v65
    %v76 = vunpack.c.h.b16 %v65
    %v77 = vunpack.c.l.b16 %v66
    %v78 = vunpack.c.h.b16 %v66
    %v79 = vpack.c.b16 %v75, %v71
    %v80 = vpack.c.b16 %v76, %v72
    %v81 = vpack.c.b16 %v77, %v73
    %v82 = vpack.c.b16 %v78, %v74
    %83 = vrot.lane.b32.xlu0 %v79, 127
    %v84 = vpop.permute.xlu0 %83
    %85 = vrot.lane.b32.xlu0 %v80, 127
    %v86 = vpop.permute.xlu0 %85
    %87 = vrot.lane.b32.xlu0 %v81, 127
    %v88 = vpop.permute.xlu0 %87
    %89 = vrot.lane.b32.xlu0 %v82, 127
    %v90 = vpop.permute.xlu0 %89
    %vm91 = vcmask 1039360
    %v92 = vsel %vm91, %v84, %v86
    %v93 = vsel %vm91, %v86, %v88
    %v94 = vsel %vm91, %v88, %v90
    %98 = vst [vmem:[#allocation2 + $0x30] sm:$0xff] %v92
    %99 = vst [vmem:[#allocation2 + $0x38] sm:$0xff] %v93
    %100 = vst [vmem:[#allocation2 + $0x40] sm:$0xff] %v94
    %v101 = vld [vmem:[#allocation5] sm:$0xff]
    %v102 = vld [vmem:[#allocation5 + $0x8] sm:$0xff]
    %v103 = vld [vmem:[#allocation5 + $0x10] sm:$0xff]
    %v104 = vld [vmem:[#allocation5 + $0x18] sm:$0xff]
    %v109 = vunpack.c.l.b16 %v101
    %v110 = vunpack.c.h.b16 %v101
    %v111 = vunpack.c.l.b16 %v102
    %v112 = vunpack.c.h.b16 %v102
    %v113 = vunpack.c.l.b16 %v103
    %v114 = vunpack.c.h.b16 %v103
    %v115 = vunpack.c.l.b16 %v104
    %v116 = vunpack.c.h.b16 %v104
    %v117 = vpack.c.b16 %v113, %v109
    %v118 = vpack.c.b16 %v114, %v110
    %v119 = vpack.c.b16 %v115, %v111
    %v120 = vpack.c.b16 %v116, %v112
    %121 = vrot.lane.b32.xlu0 %v117, 126
    %v122 = vpop.permute.xlu0 %121
    %123 = vrot.lane.b32.xlu0 %v118, 126
    %v124 = vpop.permute.xlu0 %123
    %125 = vrot.lane.b32.xlu0 %v119, 126
    %v126 = vpop.permute.xlu0 %125
    %127 = vrot.lane.b32.xlu0 %v120, 126
    %v128 = vpop.permute.xlu0 %127
    %vm129 = vcmask 1031168
    %v130 = vsel %vm129, %v122, %v124
    %v131 = vsel %vm129, %v124, %v126
    %v132 = vsel %vm129, %v126, %v128
    %136 = vst [vmem:[#allocation2 + $0x60] sm:$0xff] %v130
    %137 = vst [vmem:[#allocation2 + $0x68] sm:$0xff] %v131
    %138 = vst [vmem:[#allocation2 + $0x70] sm:$0xff] %v132
    %v139 = vld [vmem:[#allocation5] sm:$0xff]
    %v140 = vld [vmem:[#allocation5 + $0x8] sm:$0xff]
    %v141 = vld [vmem:[#allocation5 + $0x10] sm:$0xff]
    %v142 = vld [vmem:[#allocation5 + $0x18] sm:$0xff]
    %v147 = vunpack.c.l.b16 %v139
    %v148 = vunpack.c.h.b16 %v139
    %v149 = vunpack.c.l.b16 %v140
    %v150 = vunpack.c.h.b16 %v140
    %v151 = vunpack.c.l.b16 %v141
    %v152 = vunpack.c.h.b16 %v141
    %v153 = vunpack.c.l.b16 %v142
    %v154 = vunpack.c.h.b16 %v142
    %v155 = vpack.c.b16 %v151, %v147
    %v156 = vpack.c.b16 %v152, %v148
    %v157 = vpack.c.b16 %v153, %v149
    %v158 = vpack.c.b16 %v154, %v150
    %159 = vrot.lane.b32.xlu0 %v155, 108
    %v160 = vpop.permute.xlu0 %159
    %161 = vrot.lane.b32.xlu0 %v156, 108
    %v162 = vpop.permute.xlu0 %161
    %163 = vrot.lane.b32.xlu0 %v157, 108
    %v164 = vpop.permute.xlu0 %163
    %165 = vrot.lane.b32.xlu0 %v158, 108
    %v166 = vpop.permute.xlu0 %165
    %vm167 = vcmask 883712
    %v168 = vsel %vm167, %v160, %v162
    %v169 = vsel %vm167, %v162, %v164
    %v170 = vsel %vm167, %v164, %v166
    %174 = vst [vmem:[#allocation2 + $0x90] sm:$0xff] %v168
    %175 = vst [vmem:[#allocation2 + $0x98] sm:$0xff] %v169
    %176 = vst [vmem:[#allocation2 + $0xa0] sm:$0xff] %v170
    %v177 = vld [vmem:[#allocation5] sm:$0xff]
    %v178 = vld [vmem:[#allocation5 + $0x8] sm:$0xff]
    %v179 = vld [vmem:[#allocation5 + $0x10] sm:$0xff]
    %v180 = vld [vmem:[#allocation5 + $0x18] sm:$0xff]
    %v185 = vunpack.c.l.b16 %v177
    %v186 = vunpack.c.h.b16 %v177
    %v187 = vunpack.c.l.b16 %v178
    %v188 = vunpack.c.h.b16 %v178
    %v189 = vunpack.c.l.b16 %v179
    %v190 = vunpack.c.h.b16 %v179
    %v191 = vunpack.c.l.b16 %v180
    %v192 = vunpack.c.h.b16 %v180
    %v193 = vpack.c.b16 %v189, %v185
    %v194 = vpack.c.b16 %v190, %v186
    %v195 = vpack.c.b16 %v191, %v187
    %v196 = vpack.c.b16 %v192, %v188
    %197 = vrot.lane.b32.xlu0 %v193, 107
    %v198 = vpop.permute.xlu0 %197
    %199 = vrot.lane.b32.xlu0 %v194, 107
    %v200 = vpop.permute.xlu0 %199
    %201 = vrot.lane.b32.xlu0 %v195, 107
    %v202 = vpop.permute.xlu0 %201
    %203 = vrot.lane.b32.xlu0 %v196, 107
    %v204 = vpop.permute.xlu0 %203
    %vm205 = vcmask 875520
    %v206 = vsel %vm205, %v198, %v200
    %v207 = vsel %vm205, %v200, %v202
    %v208 = vsel %vm205, %v202, %v204
    %212 = vst [vmem:[#allocation2 + $0xc0] sm:$0xff] %v206
    %213 = vst [vmem:[#allocation2 + $0xc8] sm:$0xff] %v207
    %214 = vst [vmem:[#allocation2 + $0xd0] sm:$0xff] %v208
    %v215 = vld [vmem:[#allocation5] sm:$0xff]
    %v216 = vld [vmem:[#allocation5 + $0x8] sm:$0xff]
    %v217 = vld [vmem:[#allocation5 + $0x10] sm:$0xff]
    %v218 = vld [vmem:[#allocation5 + $0x18] sm:$0xff]
    %v223 = vunpack.c.l.b16 %v215
    %v224 = vunpack.c.h.b16 %v215
    %v225 = vunpack.c.l.b16 %v216
    %v226 = vunpack.c.h.b16 %v216
    %v227 = vunpack.c.l.b16 %v217
    %v228 = vunpack.c.h.b16 %v217
    %v229 = vunpack.c.l.b16 %v218
    %v230 = vunpack.c.h.b16 %v218
    %v231 = vpack.c.b16 %v227, %v223
    %v232 = vpack.c.b16 %v228, %v224
    %v233 = vpack.c.b16 %v229, %v225
    %v234 = vpack.c.b16 %v230, %v226
    %235 = vrot.lane.b32.xlu0 %v231, 106
    %v236 = vpop.permute.xlu0 %235
    %237 = vrot.lane.b32.xlu0 %v232, 106
    %v238 = vpop.permute.xlu0 %237
    %239 = vrot.lane.b32.xlu0 %v233, 106
    %v240 = vpop.permute.xlu0 %239
    %241 = vrot.lane.b32.xlu0 %v234, 106
    %v242 = vpop.permute.xlu0 %241
    %vm243 = vcmask 867328
    %v244 = vsel %vm243, %v236, %v238
    %v245 = vsel %vm243, %v238, %v240
    %v246 = vsel %vm243, %v240, %v242
    %250 = vst [vmem:[#allocation2 + $0xf0] sm:$0xff] %v244
    %251 = vst [vmem:[#allocation2 + $0xf8] sm:$0xff] %v245
    %252 = vst [vmem:[#allocation2 + $0x100] sm:$0xff] %v246
    %v253 = vld [vmem:[#allocation5] sm:$0xff]
    %v254 = vld [vmem:[#allocation5 + $0x8] sm:$0xff]
    %v255 = vld [vmem:[#allocation5 + $0x10] sm:$0xff]
    %v256 = vld [vmem:[#allocation5 + $0x18] sm:$0xff]
    %v261 = vunpack.c.l.b16 %v253
    %v262 = vunpack.c.h.b16 %v253
    %v263 = vunpack.c.l.b16 %v254
    %v264 = vunpack.c.h.b16 %v254
    %v265 = vunpack.c.l.b16 %v255
    %v266 = vunpack.c.h.b16 %v255
    %v267 = vunpack.c.l.b16 %v256
    %v268 = vunpack.c.h.b16 %v256
    %v269 = vpack.c.b16 %v265, %v261
    %v270 = vpack.c.b16 %v266, %v262
    %v271 = vpack.c.b16 %v267, %v263
    %v272 = vpack.c.b16 %v268, %v264
    %273 = vrot.lane.b32.xlu0 %v269, 88
    %v274 = vpop.permute.xlu0 %273
    %275 = vrot.lane.b32.xlu0 %v270, 88
    %v276 = vpop.permute.xlu0 %275
    %277 = vrot.lane.b32.xlu0 %v271, 88
    %v278 = vpop.permute.xlu0 %277
    %279 = vrot.lane.b32.xlu0 %v272, 88
    %v280 = vpop.permute.xlu0 %279
    %vm281 = vcmask 719872
    %v282 = vsel %vm281, %v274, %v276
    %v283 = vsel %vm281, %v276, %v278
    %v284 = vsel %vm281, %v278, %v280
    %288 = vst [vmem:[#allocation2 + $0x120] sm:$0xff] %v282
    %289 = vst [vmem:[#allocation2 + $0x128] sm:$0xff] %v283
    %290 = vst [vmem:[#allocation2 + $0x130] sm:$0xff] %v284
    %v291 = vld [vmem:[#allocation5] sm:$0xff]
    %v292 = vld [vmem:[#allocation5 + $0x8] sm:$0xff]
    %v293 = vld [vmem:[#allocation5 + $0x10] sm:$0xff]
    %v294 = vld [vmem:[#allocation5 + $0x18] sm:$0xff]
    %v299 = vunpack.c.l.b16 %v291
    %v300 = vunpack.c.h.b16 %v291
    %v301 = vunpack.c.l.b16 %v292
    %v302 = vunpack.c.h.b16 %v292
    %v303 = vunpack.c.l.b16 %v293
    %v304 = vunpack.c.h.b16 %v293
    %v305 = vunpack.c.l.b16 %v294
    %v306 = vunpack.c.h.b16 %v294
    %v307 = vpack.c.b16 %v303, %v299
    %v308 = vpack.c.b16 %v304, %v300
    %v309 = vpack.c.b16 %v305, %v301
    %v310 = vpack.c.b16 %v306, %v302
    %311 = vrot.lane.b32.xlu0 %v307, 87
    %v312 = vpop.permute.xlu0 %311
    %313 = vrot.lane.b32.xlu0 %v308, 87
    %v314 = vpop.permute.xlu0 %313
    %315 = vrot.lane.b32.xlu0 %v309, 87
    %v316 = vpop.permute.xlu0 %315
    %317 = vrot.lane.b32.xlu0 %v310, 87
    %v318 = vpop.permute.xlu0 %317
    %vm319 = vcmask 711680
    %v320 = vsel %vm319, %v312, %v314
    %v321 = vsel %vm319, %v314, %v316
    %v322 = vsel %vm319, %v316, %v318
    %326 = vst [vmem:[#allocation2 + $0x150] sm:$0xff] %v320
    %327 = vst [vmem:[#allocation2 + $0x158] sm:$0xff] %v321
    %328 = vst [vmem:[#allocation2 + $0x160] sm:$0xff] %v322
    %v329 = vld [vmem:[#allocation5] sm:$0xff]
    %v330 = vld [vmem:[#allocation5 + $0x8] sm:$0xff]
    %v331 = vld [vmem:[#allocation5 + $0x10] sm:$0xff]
    %v332 = vld [vmem:[#allocation5 + $0x18] sm:$0xff]
    %v337 = vunpack.c.l.b16 %v329
    %v338 = vunpack.c.h.b16 %v329
    %v339 = vunpack.c.l.b16 %v330
    %v340 = vunpack.c.h.b16 %v330
    %v341 = vunpack.c.l.b16 %v331
    %v342 = vunpack.c.h.b16 %v331
    %v343 = vunpack.c.l.b16 %v332
    %v344 = vunpack.c.h.b16 %v332
    %v345 = vpack.c.b16 %v341, %v337
    %v346 = vpack.c.b16 %v342, %v338
    %v347 = vpack.c.b16 %v343, %v339
    %v348 = vpack.c.b16 %v344, %v340
    %349 = vrot.lane.b32.xlu0 %v345, 86
    %v350 = vpop.permute.xlu0 %349
    %351 = vrot.lane.b32.xlu0 %v346, 86
    %v352 = vpop.permute.xlu0 %351
    %353 = vrot.lane.b32.xlu0 %v347, 86
    %v354 = vpop.permute.xlu0 %353
    %355 = vrot.lane.b32.xlu0 %v348, 86
    %v356 = vpop.permute.xlu0 %355
    %vm357 = vcmask 703488
    %v358 = vsel %vm357, %v350, %v352
    %v359 = vsel %vm357, %v352, %v354
    %v360 = vsel %vm357, %v354, %v356
    %364 = vst [vmem:[#allocation2 + $0x180] sm:$0xff] %v358
    %365 = vst [vmem:[#allocation2 + $0x188] sm:$0xff] %v359
    %366 = vst [vmem:[#allocation2 + $0x190] sm:$0xff] %v360
    %s367 = scalar_lea.vmem [#allocation5], 32
    %v368 = vld [vmem:[%s367] sm:$0xff]
    %v369 = vld [vmem:[%s367 + $0x8] sm:$0xf]
    %v370 = vld [vmem:[%s367 + $0x10] sm:$0xff]
    %v371 = vld [vmem:[%s367 + $0x18] sm:$0xf]
    %v376 = vunpack.c.l.b16 %v368
    %v377 = vunpack.c.h.b16 %v368
    %v378 = vunpack.c.l.b16 %v369
    %v379 = vunpack.c.l.b16 %v370
    %v380 = vunpack.c.h.b16 %v370
    %v381 = vunpack.c.l.b16 %v371
    %v382 = vpack.c.b16 %v379, %v376
    %v383 = vpack.c.b16 %v380, %v377
    %v384 = vpack.c.b16 %v381, %v378
    %388 = vst [vmem:[#allocation2 + $0x18] sm:$0xff] %v382
    %389 = vst [vmem:[#allocation2 + $0x20] sm:$0xff] %v383
    %390 = vst [vmem:[#allocation2 + $0x28] sm:$0xff] %v384
    %v391 = vld [vmem:[%s367] sm:$0xff]
    %v392 = vld [vmem:[%s367 + $0x8] sm:$0xff]
    %v393 = vld [vmem:[%s367 + $0x10] sm:$0xff]
    %v394 = vld [vmem:[%s367 + $0x18] sm:$0xff]
    %v399 = vunpack.c.l.b16 %v391
    %v400 = vunpack.c.h.b16 %v391
    %v401 = vunpack.c.l.b16 %v392
    %v402 = vunpack.c.h.b16 %v392
    %v403 = vunpack.c.l.b16 %v393
    %v404 = vunpack.c.h.b16 %v393
    %v405 = vunpack.c.l.b16 %v394
    %v406 = vunpack.c.h.b16 %v394
    %v407 = vpack.c.b16 %v403, %v399
    %v408 = vpack.c.b16 %v404, %v400
    %v409 = vpack.c.b16 %v405, %v401
    %v410 = vpack.c.b16 %v406, %v402
    %411 = vrot.lane.b32.xlu0 %v407, 127
    %v412 = vpop.permute.xlu0 %411
    %413 = vrot.lane.b32.xlu0 %v408, 127
    %v414 = vpop.permute.xlu0 %413
    %415 = vrot.lane.b32.xlu0 %v409, 127
    %v416 = vpop.permute.xlu0 %415
    %417 = vrot.lane.b32.xlu0 %v410, 127
    %v418 = vpop.permute.xlu0 %417
    %v419 = vsel %vm91, %v412, %v414
    %v420 = vsel %vm91, %v414, %v416
    %v421 = vsel %vm91, %v416, %v418
    %425 = vst [vmem:[#allocation2 + $0x48] sm:$0xff] %v419
    %426 = vst [vmem:[#allocation2 + $0x50] sm:$0xff] %v420
    %427 = vst [vmem:[#allocation2 + $0x58] sm:$0xff] %v421
    %v428 = vld [vmem:[%s367] sm:$0xff]
    %v429 = vld [vmem:[%s367 + $0x8] sm:$0xff]
    %v430 = vld [vmem:[%s367 + $0x10] sm:$0xff]
    %v431 = vld [vmem:[%s367 + $0x18] sm:$0xff]
    %v436 = vunpack.c.l.b16 %v428
    %v437 = vunpack.c.h.b16 %v428
    %v438 = vunpack.c.l.b16 %v429
    %v439 = vunpack.c.h.b16 %v429
    %v440 = vunpack.c.l.b16 %v430
    %v441 = vunpack.c.h.b16 %v430
    %v442 = vunpack.c.l.b16 %v431
    %v443 = vunpack.c.h.b16 %v431
    %v444 = vpack.c.b16 %v440, %v436
    %v445 = vpack.c.b16 %v441, %v437
    %v446 = vpack.c.b16 %v442, %v438
    %v447 = vpack.c.b16 %v443, %v439
    %448 = vrot.lane.b32.xlu0 %v444, 126
    %v449 = vpop.permute.xlu0 %448
    %450 = vrot.lane.b32.xlu0 %v445, 126
    %v451 = vpop.permute.xlu0 %450
    %452 = vrot.lane.b32.xlu0 %v446, 126
    %v453 = vpop.permute.xlu0 %452
    %454 = vrot.lane.b32.xlu0 %v447, 126
    %v455 = vpop.permute.xlu0 %454
    %v456 = vsel %vm129, %v449, %v451
    %v457 = vsel %vm129, %v451, %v453
    %v458 = vsel %vm129, %v453, %v455
    %462 = vst [vmem:[#allocation2 + $0x78] sm:$0xff] %v456
    %463 = vst [vmem:[#allocation2 + $0x80] sm:$0xff] %v457
    %464 = vst [vmem:[#allocation2 + $0x88] sm:$0xff] %v458
    %v465 = vld [vmem:[%s367] sm:$0xff]
    %v466 = vld [vmem:[%s367 + $0x8] sm:$0xff]
    %v467 = vld [vmem:[%s367 + $0x10] sm:$0xff]
    %v468 = vld [vmem:[%s367 + $0x18] sm:$0xff]
    %v473 = vunpack.c.l.b16 %v465
    %v474 = vunpack.c.h.b16 %v465
    %v475 = vunpack.c.l.b16 %v466
    %v476 = vunpack.c.h.b16 %v466
    %v477 = vunpack.c.l.b16 %v467
    %v478 = vunpack.c.h.b16 %v467
    %v479 = vunpack.c.l.b16 %v468
    %v480 = vunpack.c.h.b16 %v468
    %v481 = vpack.c.b16 %v477, %v473
    %v482 = vpack.c.b16 %v478, %v474
    %v483 = vpack.c.b16 %v479, %v475
    %v484 = vpack.c.b16 %v480, %v476
    %485 = vrot.lane.b32.xlu0 %v481, 108
    %v486 = vpop.permute.xlu0 %485
    %487 = vrot.lane.b32.xlu0 %v482, 108
    %v488 = vpop.permute.xlu0 %487
    %489 = vrot.lane.b32.xlu0 %v483, 108
    %v490 = vpop.permute.xlu0 %489
    %491 = vrot.lane.b32.xlu0 %v484, 108
    %v492 = vpop.permute.xlu0 %491
    %v493 = vsel %vm167, %v486, %v488
    %v494 = vsel %vm167, %v488, %v490
    %v495 = vsel %vm167, %v490, %v492
    %499 = vst [vmem:[#allocation2 + $0xa8] sm:$0xff] %v493
    %500 = vst [vmem:[#allocation2 + $0xb0] sm:$0xff] %v494
    %501 = vst [vmem:[#allocation2 + $0xb8] sm:$0xff] %v495
    %v502 = vld [vmem:[%s367] sm:$0xff]
    %v503 = vld [vmem:[%s367 + $0x8] sm:$0xff]
    %v504 = vld [vmem:[%s367 + $0x10] sm:$0xff]
    %v505 = vld [vmem:[%s367 + $0x18] sm:$0xff]
    %v510 = vunpack.c.l.b16 %v502
    %v511 = vunpack.c.h.b16 %v502
    %v512 = vunpack.c.l.b16 %v503
    %v513 = vunpack.c.h.b16 %v503
    %v514 = vunpack.c.l.b16 %v504
    %v515 = vunpack.c.h.b16 %v504
    %v516 = vunpack.c.l.b16 %v505
    %v517 = vunpack.c.h.b16 %v505
    %v518 = vpack.c.b16 %v514, %v510
    %v519 = vpack.c.b16 %v515, %v511
    %v520 = vpack.c.b16 %v516, %v512
    %v521 = vpack.c.b16 %v517, %v513
    %522 = vrot.lane.b32.xlu0 %v518, 107
    %v523 = vpop.permute.xlu0 %522
    %524 = vrot.lane.b32.xlu0 %v519, 107
    %v525 = vpop.permute.xlu0 %524
    %526 = vrot.lane.b32.xlu0 %v520, 107
    %v527 = vpop.permute.xlu0 %526
    %528 = vrot.lane.b32.xlu0 %v521, 107
    %v529 = vpop.permute.xlu0 %528
    %v530 = vsel %vm205, %v523, %v525
    %v531 = vsel %vm205, %v525, %v527
    %v532 = vsel %vm205, %v527, %v529
    %536 = vst [vmem:[#allocation2 + $0xd8] sm:$0xff] %v530
    %537 = vst [vmem:[#allocation2 + $0xe0] sm:$0xff] %v531
    %538 = vst [vmem:[#allocation2 + $0xe8] sm:$0xff] %v532
    %v539 = vld [vmem:[%s367] sm:$0xff]
    %v540 = vld [vmem:[%s367 + $0x8] sm:$0xff]
    %v541 = vld [vmem:[%s367 + $0x10] sm:$0xff]
    %v542 = vld [vmem:[%s367 + $0x18] sm:$0xff]
    %v547 = vunpack.c.l.b16 %v539
    %v548 = vunpack.c.h.b16 %v539
    %v549 = vunpack.c.l.b16 %v540
    %v550 = vunpack.c.h.b16 %v540
    %v551 = vunpack.c.l.b16 %v541
    %v552 = vunpack.c.h.b16 %v541
    %v553 = vunpack.c.l.b16 %v542
    %v554 = vunpack.c.h.b16 %v542
    %v555 = vpack.c.b16 %v551, %v547
    %v556 = vpack.c.b16 %v552, %v548
    %v557 = vpack.c.b16 %v553, %v549
    %v558 = vpack.c.b16 %v554, %v550
    %559 = vrot.lane.b32.xlu0 %v555, 106
    %v560 = vpop.permute.xlu0 %559
    %561 = vrot.lane.b32.xlu0 %v556, 106
    %v562 = vpop.permute.xlu0 %561
    %563 = vrot.lane.b32.xlu0 %v557, 106
    %v564 = vpop.permute.xlu0 %563
    %565 = vrot.lane.b32.xlu0 %v558, 106
    %v566 = vpop.permute.xlu0 %565
    %v567 = vsel %vm243, %v560, %v562
    %v568 = vsel %vm243, %v562, %v564
    %v569 = vsel %vm243, %v564, %v566
    %573 = vst [vmem:[#allocation2 + $0x108] sm:$0xff] %v567
    %574 = vst [vmem:[#allocation2 + $0x110] sm:$0xff] %v568
    %575 = vst [vmem:[#allocation2 + $0x118] sm:$0xff] %v569
    %v576 = vld [vmem:[%s367] sm:$0xff]
    %v577 = vld [vmem:[%s367 + $0x8] sm:$0xff]
    %v578 = vld [vmem:[%s367 + $0x10] sm:$0xff]
    %v579 = vld [vmem:[%s367 + $0x18] sm:$0xff]
    %v584 = vunpack.c.l.b16 %v576
    %v585 = vunpack.c.h.b16 %v576
    %v586 = vunpack.c.l.b16 %v577
    %v587 = vunpack.c.h.b16 %v577
    %v588 = vunpack.c.l.b16 %v578
    %v589 = vunpack.c.h.b16 %v578
    %v590 = vunpack.c.l.b16 %v579
    %v591 = vunpack.c.h.b16 %v579
    %v592 = vpack.c.b16 %v588, %v584
    %v593 = vpack.c.b16 %v589, %v585
    %v594 = vpack.c.b16 %v590, %v586
    %v595 = vpack.c.b16 %v591, %v587
    %596 = vrot.lane.b32.xlu0 %v592, 88
    %v597 = vpop.permute.xlu0 %596
    %598 = vrot.lane.b32.xlu0 %v593, 88
    %v599 = vpop.permute.xlu0 %598
    %600 = vrot.lane.b32.xlu0 %v594, 88
    %v601 = vpop.permute.xlu0 %600
    %602 = vrot.lane.b32.xlu0 %v595, 88
    %v603 = vpop.permute.xlu0 %602
    %v604 = vsel %vm281, %v597, %v599
    %v605 = vsel %vm281, %v599, %v601
    %v606 = vsel %vm281, %v601, %v603
    %610 = vst [vmem:[#allocation2 + $0x138] sm:$0xff] %v604
    %611 = vst [vmem:[#allocation2 + $0x140] sm:$0xff] %v605
    %612 = vst [vmem:[#allocation2 + $0x148] sm:$0xff] %v606
    %v613 = vld [vmem:[%s367] sm:$0xff]
    %v614 = vld [vmem:[%s367 + $0x8] sm:$0xff]
    %v615 = vld [vmem:[%s367 + $0x10] sm:$0xff]
    %v616 = vld [vmem:[%s367 + $0x18] sm:$0xff]
    %v621 = vunpack.c.l.b16 %v613
    %v622 = vunpack.c.h.b16 %v613
    %v623 = vunpack.c.l.b16 %v614
    %v624 = vunpack.c.h.b16 %v614
    %v625 = vunpack.c.l.b16 %v615
    %v626 = vunpack.c.h.b16 %v615
    %v627 = vunpack.c.l.b16 %v616
    %v628 = vunpack.c.h.b16 %v616
    %v629 = vpack.c.b16 %v625, %v621
    %v630 = vpack.c.b16 %v626, %v622
    %v631 = vpack.c.b16 %v627, %v623
    %v632 = vpack.c.b16 %v628, %v624
    %633 = vrot.lane.b32.xlu0 %v629, 87
    %v634 = vpop.permute.xlu0 %633
    %635 = vrot.lane.b32.xlu0 %v630, 87
    %v636 = vpop.permute.xlu0 %635
    %637 = vrot.lane.b32.xlu0 %v631, 87
    %v638 = vpop.permute.xlu0 %637
    %639 = vrot.lane.b32.xlu0 %v632, 87
    %v640 = vpop.permute.xlu0 %639
    %v641 = vsel %vm319, %v634, %v636
    %v642 = vsel %vm319, %v636, %v638
    %v643 = vsel %vm319, %v638, %v640
    %647 = vst [vmem:[#allocation2 + $0x168] sm:$0xff] %v641
    %648 = vst [vmem:[#allocation2 + $0x170] sm:$0xff] %v642
    %649 = vst [vmem:[#allocation2 + $0x178] sm:$0xff] %v643
    %v650 = vld [vmem:[%s367] sm:$0xff]
    %v651 = vld [vmem:[%s367 + $0x8] sm:$0xff]
    %v652 = vld [vmem:[%s367 + $0x10] sm:$0xff]
    %v653 = vld [vmem:[%s367 + $0x18] sm:$0xff]
    %v658 = vunpack.c.l.b16 %v650
    %v659 = vunpack.c.h.b16 %v650
    %v660 = vunpack.c.l.b16 %v651
    %v661 = vunpack.c.h.b16 %v651
    %v662 = vunpack.c.l.b16 %v652
    %v663 = vunpack.c.h.b16 %v652
    %v664 = vunpack.c.l.b16 %v653
    %v665 = vunpack.c.h.b16 %v653
    %v666 = vpack.c.b16 %v662, %v658
    %v667 = vpack.c.b16 %v663, %v659
    %v668 = vpack.c.b16 %v664, %v660
    %v669 = vpack.c.b16 %v665, %v661
    %670 = vrot.lane.b32.xlu0 %v666, 86
    %v671 = vpop.permute.xlu0 %670
    %672 = vrot.lane.b32.xlu0 %v667, 86
    %v673 = vpop.permute.xlu0 %672
    %674 = vrot.lane.b32.xlu0 %v668, 86
    %v675 = vpop.permute.xlu0 %674
    %676 = vrot.lane.b32.xlu0 %v669, 86
    %v677 = vpop.permute.xlu0 %676
    %v678 = vsel %vm357, %v671, %v673
    %v679 = vsel %vm357, %v673, %v675
    %v680 = vsel %vm357, %v675, %v677
    %684 = vst [vmem:[#allocation2 + $0x198] sm:$0xff] %v678
    %685 = vst [vmem:[#allocation2 + $0x1a0] sm:$0xff] %v679
    %686 = vst [vmem:[#allocation2 + $0x1a8] sm:$0xff] %v680
    %v687 = vld [vmem:[%s1] sm:$0xff]
    %v688 = vld [vmem:[%s1 + $0x8] sm:$0xff]
    %v689 = vld [vmem:[#allocation2] sm:$0xff]
    %v690 = vld [vmem:[#allocation2 + $0x8] sm:$0xff]
    %v691 = vld [vmem:[#allocation2 + $0x10] sm:$0xff]
    %v692 = vld [vmem:[#allocation2 + $0x18] sm:$0xff]
    %v693 = vld [vmem:[#allocation2 + $0x20] sm:$0xff]
    %v694 = vld [vmem:[#allocation2 + $0x28] sm:$0xff]
    %v695 = vld [vmem:[#allocation2 + $0x30] sm:$0xff]
    %v696 = vld [vmem:[#allocation2 + $0x38] sm:$0xff]
    %v697 = vld [vmem:[#allocation2 + $0x40] sm:$0xff]
    %v698 = vld [vmem:[#allocation2 + $0x48] sm:$0xff]
    %v699 = vld [vmem:[#allocation2 + $0x50] sm:$0xff]
    %v700 = vld [vmem:[#allocation2 + $0x58] sm:$0xff]
    %v701 = vld [vmem:[#allocation2 + $0x60] sm:$0xff]
    %v702 = vld [vmem:[#allocation2 + $0x68] sm:$0xff]
    %v703 = vld [vmem:[#allocation2 + $0x70] sm:$0xff]
    %v704 = vld [vmem:[#allocation2 + $0x78] sm:$0xff]
    %v705 = vld [vmem:[#allocation2 + $0x80] sm:$0xff]
    %v706 = vld [vmem:[#allocation2 + $0x88] sm:$0xff]
    %v707 = vld [vmem:[#allocation2 + $0x90] sm:$0xff]
    %v708 = vld [vmem:[#allocation2 + $0x98] sm:$0xff]
    %v709 = vld [vmem:[#allocation2 + $0xa0] sm:$0xff]
    %v710 = vld [vmem:[#allocation2 + $0xa8] sm:$0xff]
    %v711 = vld [vmem:[#allocation2 + $0xb0] sm:$0xff]
    %v712 = vld [vmem:[#allocation2 + $0xb8] sm:$0xff]
    %v713 = vld [vmem:[#allocation2 + $0xc0] sm:$0xff]
    %v714 = vld [vmem:[#allocation2 + $0xc8] sm:$0xff]
    %v715 = vld [vmem:[#allocation2 + $0xd0] sm:$0xff]
    %v716 = vld [vmem:[#allocation2 + $0xd8] sm:$0xff]
    %v717 = vld [vmem:[#allocation2 + $0xe0] sm:$0xff]
    %v718 = vld [vmem:[#allocation2 + $0xe8] sm:$0xff]
    %v719 = vld [vmem:[#allocation2 + $0xf0] sm:$0xff]
    %v720 = vld [vmem:[#allocation2 + $0xf8] sm:$0xff]
    %v721 = vld [vmem:[#allocation2 + $0x100] sm:$0xff]
    %v722 = vld [vmem:[#allocation2 + $0x108] sm:$0xff]
    %v723 = vld [vmem:[#allocation2 + $0x110] sm:$0xff]
    %v724 = vld [vmem:[#allocation2 + $0x118] sm:$0xff]
    %v725 = vld [vmem:[#allocation2 + $0x120] sm:$0xff]
    %v726 = vld [vmem:[#allocation2 + $0x128] sm:$0xff]
    %v727 = vld [vmem:[#allocation2 + $0x130] sm:$0xff]
    %v728 = vld [vmem:[#allocation2 + $0x138] sm:$0xff]
    %v729 = vld [vmem:[#allocation2 + $0x140] sm:$0xff]
    %v730 = vld [vmem:[#allocation2 + $0x148] sm:$0xff]
    %v731 = vld [vmem:[#allocation2 + $0x150] sm:$0xff]
    %v732 = vld [vmem:[#allocation2 + $0x158] sm:$0xff]
    %v733 = vld [vmem:[#allocation2 + $0x160] sm:$0xff]
    %v734 = vld [vmem:[#allocation2 + $0x168] sm:$0xff]
    %v735 = vld [vmem:[#allocation2 + $0x170] sm:$0xff]
    %v736 = vld [vmem:[#allocation2 + $0x178] sm:$0xff]
    %v737 = vld [vmem:[#allocation2 + $0x180] sm:$0xff]
    %v738 = vld [vmem:[#allocation2 + $0x188] sm:$0xff]
    %v739 = vld [vmem:[#allocation2 + $0x190] sm:$0xff]
    %v740 = vld [vmem:[#allocation2 + $0x198] sm:$0xff]
    %v741 = vld [vmem:[#allocation2 + $0x1a0] sm:$0xff]
    %v742 = vld [vmem:[#allocation2 + $0x1a8] sm:$0xff]
    %v743 = vld [vmem:[%s2] sm:$0xff]
    %v744 = vld [vmem:[%s2 + $0x8] sm:$0xff]
    %746 = vset.pattern.permute.xlu0 0
    %747 = vperm.xlu0 %746, %v743
    %v748 = vpop.permute.xlu0 %747
    %751 = vset.pattern.permute.xlu0 0
    %752 = vperm.xlu0 %751, %v744
    %v753 = vpop.permute.xlu0 %752
    %v757 = vunpack.c.l.b16 %v687
    %v758 = vunpack.c.h.b16 %v687
    %v759 = vunpack.c.l.b16 %v688
    %v760 = vunpack.c.h.b16 %v688
    %v761 = vpack.c.b16 %v759, %v757
    %v762 = vpack.c.b16 %v760, %v758
    %vm764 = vcmask 130048
    %v766 = vsel %vm764, %v762, 0
    %768 = vmatprep.subr.bf16.mxu0 %v690
    %769 = vmatpush1.bf16.msra.mxu0 %v689
    %770 = vmatprep.subr.bf16.mxu0 %v696
    %771 = vmatpush1.bf16.msra.mxu0 %v695
    %772 = vmatprep.subr.bf16.mxu0 %v702
    %773 = vmatpush1.bf16.msra.mxu0 %v701
    %774 = vmatprep.subr.bf16.mxu0 %v708
    %775 = vmatpush1.bf16.msra.mxu0 %v707
    %776 = vmatprep.subr.bf16.mxu0 %v714
    %777 = vmatpush1.bf16.msra.mxu0 %v713
    %778 = vmatprep.subr.bf16.mxu0 %v720
    %779 = vmatpush1.bf16.msra.mxu0 %v719
    %780 = vmatprep.subr.bf16.mxu0 %v726
    %781 = vmatpush1.bf16.msra.mxu0 %v725
    %782 = vmatprep.subr.bf16.mxu0 %v732
    %783 = vmatpush1.bf16.msra.mxu0 %v731
    %784 = vmatprep.subr.bf16.mxu0 %v738
    %785 = vmatpush1.bf16.msra.mxu0 %v737
    %786 = vmatprep.subr.bf16.mxu0 0
    %787 = vmatpush1.bf16.msra.mxu0 0
    %788 = vmatprep.subr.bf16.mxu0 0
    %789 = vmatpush1.bf16.msra.mxu0 0
    %790 = vmatprep.subr.bf16.mxu0 0
    %791 = vmatpush1.bf16.msra.mxu0 0
    %792 = vmatprep.subr.bf16.mxu0 0
    %793 = vmatpush1.bf16.msra.mxu0 0
    %794 = vmatprep.subr.bf16.mxu0 0
    %795 = vmatpush1.bf16.msra.mxu0 0
    %796 = vmatprep.subr.bf16.mxu0 0
    %797 = vmatpush1.bf16.msra.mxu0 0
    %798 = vmatprep.subr.bf16.mxu0 0
    %799 = vmatpush1.bf16.msra.mxu0 0
    %800 = vmatprep.mubr.bf16.mxu0 %v766
    %801 = vmatmul.mubr.bf16.gmra.mrb[0].mxu0 %v761
    %v802 = vpop.f32.mrb[0].mxu0
    %v803 = vadd.f32 %v748, %v802
    %v804 = vpop.f32.mrb[0].mxu0
    %v805 = vadd.f32 %v748, %v804
    %v806 = vpop.f32.mrb[0].mxu0
    %v807 = vadd.f32 %v753, %v806
    %v808 = vpop.f32.mrb[0].mxu0
    %v809 = vadd.f32 %v753, %v808
    %810 = vdwg.mxu0
    %811 = vmatprep.subr.bf16.mxu0 %v692
    %812 = vmatpush1.bf16.msra.mxu0 %v691
    %813 = vmatprep.subr.bf16.mxu0 %v698
    %814 = vmatpush1.bf16.msra.mxu0 %v697
    %815 = vmatprep.subr.bf16.mxu0 %v704
    %816 = vmatpush1.bf16.msra.mxu0 %v703
    %817 = vmatprep.subr.bf16.mxu0 %v710
    %818 = vmatpush1.bf16.msra.mxu0 %v709
    %819 = vmatprep.subr.bf16.mxu0 %v716
    %820 = vmatpush1.bf16.msra.mxu0 %v715
    %821 = vmatprep.subr.bf16.mxu0 %v722
    %822 = vmatpush1.bf16.msra.mxu0 %v721
    %823 = vmatprep.subr.bf16.mxu0 %v728
    %824 = vmatpush1.bf16.msra.mxu0 %v727
    %825 = vmatprep.subr.bf16.mxu0 %v734
    %826 = vmatpush1.bf16.msra.mxu0 %v733
    %827 = vmatprep.subr.bf16.mxu0 %v740
    %828 = vmatpush1.bf16.msra.mxu0 %v739
    %829 = vmatprep.subr.bf16.mxu0 0
    %830 = vmatpush1.bf16.msra.mxu0 0
    %831 = vmatprep.subr.bf16.mxu0 0
    %832 = vmatpush1.bf16.msra.mxu0 0
    %833 = vmatprep.subr.bf16.mxu0 0
    %834 = vmatpush1.bf16.msra.mxu0 0
    %835 = vmatprep.subr.bf16.mxu0 0
    %836 = vmatpush1.bf16.msra.mxu0 0
    %837 = vmatprep.subr.bf16.mxu0 0
    %838 = vmatpush1.bf16.msra.mxu0 0
    %839 = vmatprep.subr.bf16.mxu0 0
    %840 = vmatpush1.bf16.msra.mxu0 0
    %841 = vmatprep.subr.bf16.mxu0 0
    %842 = vmatpush1.bf16.msra.mxu0 0
    %843 = vmatprep.mubr.bf16.mxu0 %v766
    %844 = vmatmul.mubr.bf16.gmra.mrb[0].mxu0 %v761
    %v845 = vpop.f32.mrb[0].mxu0
    %v846 = vadd.f32 %v748, %v845
    %v847 = vpop.f32.mrb[0].mxu0
    %v848 = vadd.f32 %v748, %v847
    %v849 = vpop.f32.mrb[0].mxu0
    %v850 = vadd.f32 %v753, %v849
    %v851 = vpop.f32.mrb[0].mxu0
    %v852 = vadd.f32 %v753, %v851
    %853 = vdwg.mxu0
    %854 = vmatprep.subr.bf16.mxu0 %v694
    %855 = vmatpush1.bf16.msra.mxu0 %v693
    %856 = vmatprep.subr.bf16.mxu0 %v700
    %857 = vmatpush1.bf16.msra.mxu0 %v699
    %858 = vmatprep.subr.bf16.mxu0 %v706
    %859 = vmatpush1.bf16.msra.mxu0 %v705
    %860 = vmatprep.subr.bf16.mxu0 %v712
    %861 = vmatpush1.bf16.msra.mxu0 %v711
    %862 = vmatprep.subr.bf16.mxu0 %v718
    %863 = vmatpush1.bf16.msra.mxu0 %v717
    %864 = vmatprep.subr.bf16.mxu0 %v724
    %865 = vmatpush1.bf16.msra.mxu0 %v723
    %866 = vmatprep.subr.bf16.mxu0 %v730
    %867 = vmatpush1.bf16.msra.mxu0 %v729
    %868 = vmatprep.subr.bf16.mxu0 %v736
    %869 = vmatpush1.bf16.msra.mxu0 %v735
    %870 = vmatprep.subr.bf16.mxu0 %v742
    %871 = vmatpush1.bf16.msra.mxu0 %v741
    %872 = vmatprep.subr.bf16.mxu0 0
    %873 = vmatpush1.bf16.msra.mxu0 0
    %874 = vmatprep.subr.bf16.mxu0 0
    %875 = vmatpush1.bf16.msra.mxu0 0
    %876 = vmatprep.subr.bf16.mxu0 0
    %877 = vmatpush1.bf16.msra.mxu0 0
    %878 = vmatprep.subr.bf16.mxu0 0
    %879 = vmatpush1.bf16.msra.mxu0 0
    %880 = vmatprep.subr.bf16.mxu0 0
    %881 = vmatpush1.bf16.msra.mxu0 0
    %882 = vmatprep.subr.bf16.mxu0 0
    %883 = vmatpush1.bf16.msra.mxu0 0
    %884 = vmatprep.subr.bf16.mxu0 0
    %885 = vmatpush1.bf16.msra.mxu0 0
    %886 = vmatprep.mubr.bf16.mxu0 %v766
    %887 = vmatmul.mubr.bf16.gmra.mrb[0].mxu0 %v761
    %v888 = vpop.f32.mrb[0].mxu0
    %v889 = vadd.f32 %v748, %v888
    %v890 = vpop.f32.mrb[0].mxu0
    %v891 = vadd.f32 %v748, %v890
    %v892 = vpop.f32.mrb[0].mxu0
    %v893 = vadd.f32 %v753, %v892
    %v894 = vpop.f32.mrb[0].mxu0
    %v895 = vadd.f32 %v753, %v894
    %896 = vdwg.mxu0
    %v897 = vmul.f32 %v803, 0.1
    %v898 = vmul.f32 %v805, 0.1
    %v899 = vmul.f32 %v846, 0.1
    %v900 = vmul.f32 %v848, 0.1
    %v901 = vmul.f32 %v889, 0.1
    %v902 = vmul.f32 %v891, 0.1
    %v903 = vmul.f32 %v807, 0.1
    %v904 = vmul.f32 %v809, 0.1
    %v905 = vmul.f32 %v850, 0.1
    %v906 = vmul.f32 %v852, 0.1
    %v907 = vmul.f32 %v893, 0.1
    %v908 = vmul.f32 %v895, 0.1
    %v909 = vmax.f32 %v803, %v897
    %v910 = vmax.f32 %v805, %v898
    %v911 = vmax.f32 %v846, %v899
    %v912 = vmax.f32 %v848, %v900
    %v913 = vmax.f32 %v889, %v901
    %v914 = vmax.f32 %v891, %v902
    %v915 = vmax.f32 %v807, %v903
    %v916 = vmax.f32 %v809, %v904
    %v917 = vmax.f32 %v850, %v905
    %v918 = vmax.f32 %v852, %v906
    %v919 = vmax.f32 %v893, %v907
    %v920 = vmax.f32 %v895, %v908
    %v921 = vld [vmem:[%s3] sm:$0x3f]
    %v923 = vlaneseq
    %v924 = vshrl.u32 %v923, 7
    %v925 = vsub.s32 0, %v924
    %v926 = vrot.slane %v921, %v925
    %v927 = vlaneseq
    %v928 = vshrl.u32 %v927, 7
    %v929 = vsub.s32 1, %v928
    %v930 = vrot.slane %v921, %v929
    %v931 = vlaneseq
    %v932 = vshrl.u32 %v931, 7
    %v933 = vsub.s32 2, %v932
    %v934 = vrot.slane %v921, %v933
    %v935 = vlaneseq
    %v936 = vshrl.u32 %v935, 7
    %v937 = vsub.s32 3, %v936
    %v938 = vrot.slane %v921, %v937
    %v939 = vlaneseq
    %v940 = vshrl.u32 %v939, 7
    %v941 = vsub.s32 4, %v940
    %v942 = vrot.slane %v921, %v941
    %v943 = vlaneseq
    %v944 = vshrl.u32 %v943, 7
    %v945 = vsub.s32 5, %v944
    %v946 = vrot.slane %v921, %v945
    %v953 = vmul.f32 %v909, %v926
    %v954 = vmul.f32 %v910, %v930
    %v955 = vmul.f32 %v911, %v934
    %v956 = vmul.f32 %v912, %v938
    %v957 = vmul.f32 %v913, %v942
    %v958 = vmul.f32 %v914, %v946
    %v959 = vmul.f32 %v915, %v926
    %v960 = vmul.f32 %v916, %v930
    %v961 = vmul.f32 %v917, %v934
    %v962 = vmul.f32 %v918, %v938
    %v963 = vmul.f32 %v919, %v942
    %v964 = vmul.f32 %v920, %v946
    %v965 = vpack.c.bf16 %v959, %v953
    %v966 = vpack.c.bf16 %v960, %v954
    %v967 = vpack.c.bf16 %v961, %v955
    %v968 = vpack.c.bf16 %v962, %v956
    %v969 = vpack.c.bf16 %v963, %v957
    %v970 = vpack.c.bf16 %v964, %v958
    %971 = vst [vmem:[#allocation3] sm:$0xff] %v965
    %972 = vst [vmem:[#allocation3 + $0x8] sm:$0xff] %v966
    %973 = vst [vmem:[#allocation3 + $0x10] sm:$0xff] %v967
    %974 = vst [vmem:[#allocation3 + $0x18] sm:$0xff] %v968
    %975 = vst [vmem:[#allocation3 + $0x20] sm:$0xff] %v969
    %976 = vst [vmem:[#allocation3 + $0x28] sm:$0xff] %v970
    %v977 = vld [vmem:[#allocation3] sm:$0xff]
    %v978 = vld [vmem:[#allocation3 + $0x8] sm:$0xff]
    %v979 = vld [vmem:[#allocation3 + $0x10] sm:$0xff]
    %980 = vst [vmem:[#allocation4] sm:$0xff] %v977
    %981 = vst [vmem:[#allocation4 + $0x8] sm:$0xff] %v978
    %982 = vst [vmem:[#allocation4 + $0x10] sm:$0xff] %v979
    %v983 = vld [vmem:[#allocation3] sm:$0xff]
    %v984 = vld [vmem:[#allocation3 + $0x8] sm:$0xff]
    %v985 = vld [vmem:[#allocation3 + $0x10] sm:$0xff]
    %v986 = vld [vmem:[#allocation3 + $0x18] sm:$0xff]
    %991 = vrot.lane.b32.xlu0 %v983, 127
    %v992 = vpop.permute.xlu0 %991
    %993 = vrot.lane.b32.xlu0 %v984, 127
    %v994 = vpop.permute.xlu0 %993
    %995 = vrot.lane.b32.xlu0 %v985, 127
    %v996 = vpop.permute.xlu0 %995
    %997 = vrot.lane.b32.xlu0 %v986, 127
    %v998 = vpop.permute.xlu0 %997
    %v999 = vsel %vm91, %v992, %v994
    %v1000 = vsel %vm91, %v994, %v996
    %v1001 = vsel %vm91, %v996, %v998
    %1005 = vst [vmem:[#allocation4 + $0x30] sm:$0xff] %v999
    %1006 = vst [vmem:[#allocation4 + $0x38] sm:$0xff] %v1000
    %1007 = vst [vmem:[#allocation4 + $0x40] sm:$0xff] %v1001
    %v1008 = vld [vmem:[#allocation3] sm:$0xff]
    %v1009 = vld [vmem:[#allocation3 + $0x8] sm:$0xff]
    %v1010 = vld [vmem:[#allocation3 + $0x10] sm:$0xff]
    %v1011 = vld [vmem:[#allocation3 + $0x18] sm:$0xff]
    %1016 = vrot.lane.b32.xlu0 %v1008, 126
    %v1017 = vpop.permute.xlu0 %1016
    %1018 = vrot.lane.b32.xlu0 %v1009, 126
    %v1019 = vpop.permute.xlu0 %1018
    %1020 = vrot.lane.b32.xlu0 %v1010, 126
    %v1021 = vpop.permute.xlu0 %1020
    %1022 = vrot.lane.b32.xlu0 %v1011, 126
    %v1023 = vpop.permute.xlu0 %1022
    %v1024 = vsel %vm129, %v1017, %v1019
    %v1025 = vsel %vm129, %v1019, %v1021
    %v1026 = vsel %vm129, %v1021, %v1023
    %1030 = vst [vmem:[#allocation4 + $0x60] sm:$0xff] %v1024
    %1031 = vst [vmem:[#allocation4 + $0x68] sm:$0xff] %v1025
    %1032 = vst [vmem:[#allocation4 + $0x70] sm:$0xff] %v1026
    %v1033 = vld [vmem:[#allocation3] sm:$0xff]
    %v1034 = vld [vmem:[#allocation3 + $0x8] sm:$0xff]
    %v1035 = vld [vmem:[#allocation3 + $0x10] sm:$0xff]
    %v1036 = vld [vmem:[#allocation3 + $0x18] sm:$0xff]
    %1041 = vrot.lane.b32.xlu0 %v1033, 108
    %v1042 = vpop.permute.xlu0 %1041
    %1043 = vrot.lane.b32.xlu0 %v1034, 108
    %v1044 = vpop.permute.xlu0 %1043
    %1045 = vrot.lane.b32.xlu0 %v1035, 108
    %v1046 = vpop.permute.xlu0 %1045
    %1047 = vrot.lane.b32.xlu0 %v1036, 108
    %v1048 = vpop.permute.xlu0 %1047
    %v1049 = vsel %vm167, %v1042, %v1044
    %v1050 = vsel %vm167, %v1044, %v1046
    %v1051 = vsel %vm167, %v1046, %v1048
    %1055 = vst [vmem:[#allocation4 + $0x90] sm:$0xff] %v1049
    %1056 = vst [vmem:[#allocation4 + $0x98] sm:$0xff] %v1050
    %1057 = vst [vmem:[#allocation4 + $0xa0] sm:$0xff] %v1051
    %v1058 = vld [vmem:[#allocation3] sm:$0xff]
    %v1059 = vld [vmem:[#allocation3 + $0x8] sm:$0xff]
    %v1060 = vld [vmem:[#allocation3 + $0x10] sm:$0xff]
    %v1061 = vld [vmem:[#allocation3 + $0x18] sm:$0xff]
    %1066 = vrot.lane.b32.xlu0 %v1058, 107
    %v1067 = vpop.permute.xlu0 %1066
    %1068 = vrot.lane.b32.xlu0 %v1059, 107
    %v1069 = vpop.permute.xlu0 %1068
    %1070 = vrot.lane.b32.xlu0 %v1060, 107
    %v1071 = vpop.permute.xlu0 %1070
    %1072 = vrot.lane.b32.xlu0 %v1061, 107
    %v1073 = vpop.permute.xlu0 %1072
    %v1074 = vsel %vm205, %v1067, %v1069
    %v1075 = vsel %vm205, %v1069, %v1071
    %v1076 = vsel %vm205, %v1071, %v1073
    %1080 = vst [vmem:[#allocation4 + $0xc0] sm:$0xff] %v1074
    %1081 = vst [vmem:[#allocation4 + $0xc8] sm:$0xff] %v1075
    %1082 = vst [vmem:[#allocation4 + $0xd0] sm:$0xff] %v1076
    %v1083 = vld [vmem:[#allocation3] sm:$0xff]
    %v1084 = vld [vmem:[#allocation3 + $0x8] sm:$0xff]
    %v1085 = vld [vmem:[#allocation3 + $0x10] sm:$0xff]
    %v1086 = vld [vmem:[#allocation3 + $0x18] sm:$0xff]
    %1091 = vrot.lane.b32.xlu0 %v1083, 106
    %v1092 = vpop.permute.xlu0 %1091
    %1093 = vrot.lane.b32.xlu0 %v1084, 106
    %v1094 = vpop.permute.xlu0 %1093
    %1095 = vrot.lane.b32.xlu0 %v1085, 106
    %v1096 = vpop.permute.xlu0 %1095
    %1097 = vrot.lane.b32.xlu0 %v1086, 106
    %v1098 = vpop.permute.xlu0 %1097
    %v1099 = vsel %vm243, %v1092, %v1094
    %v1100 = vsel %vm243, %v1094, %v1096
    %v1101 = vsel %vm243, %v1096, %v1098
    %1105 = vst [vmem:[#allocation4 + $0xf0] sm:$0xff] %v1099
    %1106 = vst [vmem:[#allocation4 + $0xf8] sm:$0xff] %v1100
    %1107 = vst [vmem:[#allocation4 + $0x100] sm:$0xff] %v1101
    %v1108 = vld [vmem:[#allocation3] sm:$0xff]
    %v1109 = vld [vmem:[#allocation3 + $0x8] sm:$0xff]
    %v1110 = vld [vmem:[#allocation3 + $0x10] sm:$0xff]
    %v1111 = vld [vmem:[#allocation3 + $0x18] sm:$0xff]
    %1116 = vrot.lane.b32.xlu0 %v1108, 88
    %v1117 = vpop.permute.xlu0 %1116
    %1118 = vrot.lane.b32.xlu0 %v1109, 88
    %v1119 = vpop.permute.xlu0 %1118
    %1120 = vrot.lane.b32.xlu0 %v1110, 88
    %v1121 = vpop.permute.xlu0 %1120
    %1122 = vrot.lane.b32.xlu0 %v1111, 88
    %v1123 = vpop.permute.xlu0 %1122
    %v1124 = vsel %vm281, %v1117, %v1119
    %v1125 = vsel %vm281, %v1119, %v1121
    %v1126 = vsel %vm281, %v1121, %v1123
    %1130 = vst [vmem:[#allocation4 + $0x120] sm:$0xff] %v1124
    %1131 = vst [vmem:[#allocation4 + $0x128] sm:$0xff] %v1125
    %1132 = vst [vmem:[#allocation4 + $0x130] sm:$0xff] %v1126
    %v1133 = vld [vmem:[#allocation3] sm:$0xff]
    %v1134 = vld [vmem:[#allocation3 + $0x8] sm:$0xff]
    %v1135 = vld [vmem:[#allocation3 + $0x10] sm:$0xff]
    %v1136 = vld [vmem:[#allocation3 + $0x18] sm:$0xff]
    %1141 = vrot.lane.b32.xlu0 %v1133, 87
    %v1142 = vpop.permute.xlu0 %1141
    %1143 = vrot.lane.b32.xlu0 %v1134, 87
    %v1144 = vpop.permute.xlu0 %1143
    %1145 = vrot.lane.b32.xlu0 %v1135, 87
    %v1146 = vpop.permute.xlu0 %1145
    %1147 = vrot.lane.b32.xlu0 %v1136, 87
    %v1148 = vpop.permute.xlu0 %1147
    %v1149 = vsel %vm319, %v1142, %v1144
    %v1150 = vsel %vm319, %v1144, %v1146
    %v1151 = vsel %vm319, %v1146, %v1148
    %1155 = vst [vmem:[#allocation4 + $0x150] sm:$0xff] %v1149
    %1156 = vst [vmem:[#allocation4 + $0x158] sm:$0xff] %v1150
    %1157 = vst [vmem:[#allocation4 + $0x160] sm:$0xff] %v1151
    %v1158 = vld [vmem:[#allocation3] sm:$0xff]
    %v1159 = vld [vmem:[#allocation3 + $0x8] sm:$0xff]
    %v1160 = vld [vmem:[#allocation3 + $0x10] sm:$0xff]
    %v1161 = vld [vmem:[#allocation3 + $0x18] sm:$0xff]
    %1166 = vrot.lane.b32.xlu0 %v1158, 86
    %v1167 = vpop.permute.xlu0 %1166
    %1168 = vrot.lane.b32.xlu0 %v1159, 86
    %v1169 = vpop.permute.xlu0 %1168
    %1170 = vrot.lane.b32.xlu0 %v1160, 86
    %v1171 = vpop.permute.xlu0 %1170
    %1172 = vrot.lane.b32.xlu0 %v1161, 86
    %v1173 = vpop.permute.xlu0 %1172
    %v1174 = vsel %vm357, %v1167, %v1169
    %v1175 = vsel %vm357, %v1169, %v1171
    %v1176 = vsel %vm357, %v1171, %v1173
    %1180 = vst [vmem:[#allocation4 + $0x180] sm:$0xff] %v1174
    %1181 = vst [vmem:[#allocation4 + $0x188] sm:$0xff] %v1175
    %1182 = vst [vmem:[#allocation4 + $0x190] sm:$0xff] %v1176
    %v1183 = vld [vmem:[#allocation3 + $0x18] sm:$0xff]
    %v1184 = vld [vmem:[#allocation3 + $0x20] sm:$0xff]
    %v1185 = vld [vmem:[#allocation3 + $0x28] sm:$0xff]
    %1186 = vst [vmem:[#allocation4 + $0x18] sm:$0xff] %v1183
    %1187 = vst [vmem:[#allocation4 + $0x20] sm:$0xff] %v1184
    %1188 = vst [vmem:[#allocation4 + $0x28] sm:$0xff] %v1185
    %v1189 = vld [vmem:[#allocation3 + $0x18] sm:$0xff]
    %v1190 = vld [vmem:[#allocation3 + $0x20] sm:$0xff]
    %v1191 = vld [vmem:[#allocation3 + $0x28] sm:$0xff]
    %v1192 = vld [vmem:[#allocation3 + $0x30] sm:$0xff]
    %1197 = vrot.lane.b32.xlu0 %v1189, 127
    %v1198 = vpop.permute.xlu0 %1197
    %1199 = vrot.lane.b32.xlu0 %v1190, 127
    %v1200 = vpop.permute.xlu0 %1199
    %1201 = vrot.lane.b32.xlu0 %v1191, 127
    %v1202 = vpop.permute.xlu0 %1201
    %1203 = vrot.lane.b32.xlu0 %v1192, 127
    %v1204 = vpop.permute.xlu0 %1203
    %v1205 = vsel %vm91, %v1198, %v1200
    %v1206 = vsel %vm91, %v1200, %v1202
    %v1207 = vsel %vm91, %v1202, %v1204
    %1211 = vst [vmem:[#allocation4 + $0x48] sm:$0xff] %v1205
    %1212 = vst [vmem:[#allocation4 + $0x50] sm:$0xff] %v1206
    %1213 = vst [vmem:[#allocation4 + $0x58] sm:$0xff] %v1207
    %v1214 = vld [vmem:[#allocation3 + $0x18] sm:$0xff]
    %v1215 = vld [vmem:[#allocation3 + $0x20] sm:$0xff]
    %v1216 = vld [vmem:[#allocation3 + $0x28] sm:$0xff]
    %v1217 = vld [vmem:[#allocation3 + $0x30] sm:$0xff]
    %1222 = vrot.lane.b32.xlu0 %v1214, 126
    %v1223 = vpop.permute.xlu0 %1222
    %1224 = vrot.lane.b32.xlu0 %v1215, 126
    %v1225 = vpop.permute.xlu0 %1224
    %1226 = vrot.lane.b32.xlu0 %v1216, 126
    %v1227 = vpop.permute.xlu0 %1226
    %1228 = vrot.lane.b32.xlu0 %v1217, 126
    %v1229 = vpop.permute.xlu0 %1228
    %v1230 = vsel %vm129, %v1223, %v1225
    %v1231 = vsel %vm129, %v1225, %v1227
    %v1232 = vsel %vm129, %v1227, %v1229
    %1236 = vst [vmem:[#allocation4 + $0x78] sm:$0xff] %v1230
    %1237 = vst [vmem:[#allocation4 + $0x80] sm:$0xff] %v1231
    %1238 = vst [vmem:[#allocation4 + $0x88] sm:$0xff] %v1232
    %v1239 = vld [vmem:[#allocation3 + $0x18] sm:$0xff]
    %v1240 = vld [vmem:[#allocation3 + $0x20] sm:$0xff]
    %v1241 = vld [vmem:[#allocation3 + $0x28] sm:$0xff]
    %v1242 = vld [vmem:[#allocation3 + $0x30] sm:$0xff]
    %1247 = vrot.lane.b32.xlu0 %v1239, 108
    %v1248 = vpop.permute.xlu0 %1247
    %1249 = vrot.lane.b32.xlu0 %v1240, 108
    %v1250 = vpop.permute.xlu0 %1249
    %1251 = vrot.lane.b32.xlu0 %v1241, 108
    %v1252 = vpop.permute.xlu0 %1251
    %1253 = vrot.lane.b32.xlu0 %v1242, 108
    %v1254 = vpop.permute.xlu0 %1253
    %v1255 = vsel %vm167, %v1248, %v1250
    %v1256 = vsel %vm167, %v1250, %v1252
    %v1257 = vsel %vm167, %v1252, %v1254
    %1261 = vst [vmem:[#allocation4 + $0xa8] sm:$0xff] %v1255
    %1262 = vst [vmem:[#allocation4 + $0xb0] sm:$0xff] %v1256
    %1263 = vst [vmem:[#allocation4 + $0xb8] sm:$0xff] %v1257
    %v1264 = vld [vmem:[#allocation3 + $0x18] sm:$0xff]
    %v1265 = vld [vmem:[#allocation3 + $0x20] sm:$0xff]
    %v1266 = vld [vmem:[#allocation3 + $0x28] sm:$0xff]
    %v1267 = vld [vmem:[#allocation3 + $0x30] sm:$0xff]
    %1272 = vrot.lane.b32.xlu0 %v1264, 107
    %v1273 = vpop.permute.xlu0 %1272
    %1274 = vrot.lane.b32.xlu0 %v1265, 107
    %v1275 = vpop.permute.xlu0 %1274
    %1276 = vrot.lane.b32.xlu0 %v1266, 107
    %v1277 = vpop.permute.xlu0 %1276
    %1278 = vrot.lane.b32.xlu0 %v1267, 107
    %v1279 = vpop.permute.xlu0 %1278
    %v1280 = vsel %vm205, %v1273, %v1275
    %v1281 = vsel %vm205, %v1275, %v1277
    %v1282 = vsel %vm205, %v1277, %v1279
    %1286 = vst [vmem:[#allocation4 + $0xd8] sm:$0xff] %v1280
    %1287 = vst [vmem:[#allocation4 + $0xe0] sm:$0xff] %v1281
    %1288 = vst [vmem:[#allocation4 + $0xe8] sm:$0xff] %v1282
    %v1289 = vld [vmem:[#allocation3 + $0x18] sm:$0xff]
    %v1290 = vld [vmem:[#allocation3 + $0x20] sm:$0xff]
    %v1291 = vld [vmem:[#allocation3 + $0x28] sm:$0xff]
    %v1292 = vld [vmem:[#allocation3 + $0x30] sm:$0xff]
    %1297 = vrot.lane.b32.xlu0 %v1289, 106
    %v1298 = vpop.permute.xlu0 %1297
    %1299 = vrot.lane.b32.xlu0 %v1290, 106
    %v1300 = vpop.permute.xlu0 %1299
    %1301 = vrot.lane.b32.xlu0 %v1291, 106
    %v1302 = vpop.permute.xlu0 %1301
    %1303 = vrot.lane.b32.xlu0 %v1292, 106
    %v1304 = vpop.permute.xlu0 %1303
    %v1305 = vsel %vm243, %v1298, %v1300
    %v1306 = vsel %vm243, %v1300, %v1302
    %v1307 = vsel %vm243, %v1302, %v1304
    %1311 = vst [vmem:[#allocation4 + $0x108] sm:$0xff] %v1305
    %1312 = vst [vmem:[#allocation4 + $0x110] sm:$0xff] %v1306
    %1313 = vst [vmem:[#allocation4 + $0x118] sm:$0xff] %v1307
    %v1314 = vld [vmem:[#allocation3 + $0x18] sm:$0xff]
    %v1315 = vld [vmem:[#allocation3 + $0x20] sm:$0xff]
    %v1316 = vld [vmem:[#allocation3 + $0x28] sm:$0xff]
    %v1317 = vld [vmem:[#allocation3 + $0x30] sm:$0xff]
    %1322 = vrot.lane.b32.xlu0 %v1314, 88
    %v1323 = vpop.permute.xlu0 %1322
    %1324 = vrot.lane.b32.xlu0 %v1315, 88
    %v1325 = vpop.permute.xlu0 %1324
    %1326 = vrot.lane.b32.xlu0 %v1316, 88
    %v1327 = vpop.permute.xlu0 %1326
    %1328 = vrot.lane.b32.xlu0 %v1317, 88
    %v1329 = vpop.permute.xlu0 %1328
    %v1330 = vsel %vm281, %v1323, %v1325
    %v1331 = vsel %vm281, %v1325, %v1327
    %v1332 = vsel %vm281, %v1327, %v1329
    %1336 = vst [vmem:[#allocation4 + $0x138] sm:$0xff] %v1330
    %1337 = vst [vmem:[#allocation4 + $0x140] sm:$0xff] %v1331
    %1338 = vst [vmem:[#allocation4 + $0x148] sm:$0xff] %v1332
    %v1339 = vld [vmem:[#allocation3 + $0x18] sm:$0xff]
    %v1340 = vld [vmem:[#allocation3 + $0x20] sm:$0xff]
    %v1341 = vld [vmem:[#allocation3 + $0x28] sm:$0xff]
    %v1342 = vld [vmem:[#allocation3 + $0x30] sm:$0xff]
    %1347 = vrot.lane.b32.xlu0 %v1339, 87
    %v1348 = vpop.permute.xlu0 %1347
    %1349 = vrot.lane.b32.xlu0 %v1340, 87
    %v1350 = vpop.permute.xlu0 %1349
    %1351 = vrot.lane.b32.xlu0 %v1341, 87
    %v1352 = vpop.permute.xlu0 %1351
    %1353 = vrot.lane.b32.xlu0 %v1342, 87
    %v1354 = vpop.permute.xlu0 %1353
    %v1355 = vsel %vm319, %v1348, %v1350
    %v1356 = vsel %vm319, %v1350, %v1352
    %v1357 = vsel %vm319, %v1352, %v1354
    %1361 = vst [vmem:[#allocation4 + $0x168] sm:$0xff] %v1355
    %1362 = vst [vmem:[#allocation4 + $0x170] sm:$0xff] %v1356
    %1363 = vst [vmem:[#allocation4 + $0x178] sm:$0xff] %v1357
    %v1364 = vld [vmem:[#allocation3 + $0x18] sm:$0xff]
    %v1365 = vld [vmem:[#allocation3 + $0x20] sm:$0xff]
    %v1366 = vld [vmem:[#allocation3 + $0x28] sm:$0xff]
    %v1367 = vld [vmem:[#allocation3 + $0x30] sm:$0xff]
    %1372 = vrot.lane.b32.xlu0 %v1364, 86
    %v1373 = vpop.permute.xlu0 %1372
    %1374 = vrot.lane.b32.xlu0 %v1365, 86
    %v1375 = vpop.permute.xlu0 %1374
    %1376 = vrot.lane.b32.xlu0 %v1366, 86
    %v1377 = vpop.permute.xlu0 %1376
    %1378 = vrot.lane.b32.xlu0 %v1367, 86
    %v1379 = vpop.permute.xlu0 %1378
    %v1380 = vsel %vm357, %v1373, %v1375
    %v1381 = vsel %vm357, %v1375, %v1377
    %v1382 = vsel %vm357, %v1377, %v1379
    %1386 = vst [vmem:[#allocation4 + $0x198] sm:$0xff] %v1380
    %1387 = vst [vmem:[#allocation4 + $0x1a0] sm:$0xff] %v1381
    %1388 = vst [vmem:[#allocation4 + $0x1a8] sm:$0xff] %v1382
    %v1389 = vld [vmem:[%s4] sm:$0xff]
    %v1390 = vld [vmem:[#allocation4] sm:$0xff]
    %v1391 = vld [vmem:[#allocation4 + $0x8] sm:$0xff]
    %v1392 = vld [vmem:[#allocation4 + $0x10] sm:$0xff]
    %v1393 = vld [vmem:[#allocation4 + $0x18] sm:$0xff]
    %v1394 = vld [vmem:[#allocation4 + $0x20] sm:$0xff]
    %v1395 = vld [vmem:[#allocation4 + $0x28] sm:$0xff]
    %v1396 = vld [vmem:[#allocation4 + $0x30] sm:$0xff]
    %v1397 = vld [vmem:[#allocation4 + $0x38] sm:$0xff]
    %v1398 = vld [vmem:[#allocation4 + $0x40] sm:$0xff]
    %v1399 = vld [vmem:[#allocation4 + $0x48] sm:$0xff]
    %v1400 = vld [vmem:[#allocation4 + $0x50] sm:$0xff]
    %v1401 = vld [vmem:[#allocation4 + $0x58] sm:$0xff]
    %v1402 = vld [vmem:[#allocation4 + $0x60] sm:$0xff]
    %v1403 = vld [vmem:[#allocation4 + $0x68] sm:$0xff]
    %v1404 = vld [vmem:[#allocation4 + $0x70] sm:$0xff]
    %v1405 = vld [vmem:[#allocation4 + $0x78] sm:$0xff]
    %v1406 = vld [vmem:[#allocation4 + $0x80] sm:$0xff]
    %v1407 = vld [vmem:[#allocation4 + $0x88] sm:$0xff]
    %v1408 = vld [vmem:[#allocation4 + $0x90] sm:$0xff]
    %v1409 = vld [vmem:[#allocation4 + $0x98] sm:$0xff]
    %v1410 = vld [vmem:[#allocation4 + $0xa0] sm:$0xff]
    %v1411 = vld [vmem:[#allocation4 + $0xa8] sm:$0xff]
    %v1412 = vld [vmem:[#allocation4 + $0xb0] sm:$0xff]
    %v1413 = vld [vmem:[#allocation4 + $0xb8] sm:$0xff]
    %v1414 = vld [vmem:[#allocation4 + $0xc0] sm:$0xff]
    %v1415 = vld [vmem:[#allocation4 + $0xc8] sm:$0xff]
    %v1416 = vld [vmem:[#allocation4 + $0xd0] sm:$0xff]
    %v1417 = vld [vmem:[#allocation4 + $0xd8] sm:$0xff]
    %v1418 = vld [vmem:[#allocation4 + $0xe0] sm:$0xff]
    %v1419 = vld [vmem:[#allocation4 + $0xe8] sm:$0xff]
    %v1420 = vld [vmem:[#allocation4 + $0xf0] sm:$0xff]
    %v1421 = vld [vmem:[#allocation4 + $0xf8] sm:$0xff]
    %v1422 = vld [vmem:[#allocation4 + $0x100] sm:$0xff]
    %v1423 = vld [vmem:[#allocation4 + $0x108] sm:$0xff]
    %v1424 = vld [vmem:[#allocation4 + $0x110] sm:$0xff]
    %v1425 = vld [vmem:[#allocation4 + $0x118] sm:$0xff]
    %v1426 = vld [vmem:[#allocation4 + $0x120] sm:$0xff]
    %v1427 = vld [vmem:[#allocation4 + $0x128] sm:$0xff]
    %v1428 = vld [vmem:[#allocation4 + $0x130] sm:$0xff]
    %v1429 = vld [vmem:[#allocation4 + $0x138] sm:$0xff]
    %v1430 = vld [vmem:[#allocation4 + $0x140] sm:$0xff]
    %v1431 = vld [vmem:[#allocation4 + $0x148] sm:$0xff]
    %v1432 = vld [vmem:[#allocation4 + $0x150] sm:$0xff]
    %v1433 = vld [vmem:[#allocation4 + $0x158] sm:$0xff]
    %v1434 = vld [vmem:[#allocation4 + $0x160] sm:$0xff]
    %v1435 = vld [vmem:[#allocation4 + $0x168] sm:$0xff]
    %v1436 = vld [vmem:[#allocation4 + $0x170] sm:$0xff]
    %v1437 = vld [vmem:[#allocation4 + $0x178] sm:$0xff]
    %v1438 = vld [vmem:[#allocation4 + $0x180] sm:$0xff]
    %v1439 = vld [vmem:[#allocation4 + $0x188] sm:$0xff]
    %v1440 = vld [vmem:[#allocation4 + $0x190] sm:$0xff]
    %v1441 = vld [vmem:[#allocation4 + $0x198] sm:$0xff]
    %v1442 = vld [vmem:[#allocation4 + $0x1a0] sm:$0xff]
    %v1443 = vld [vmem:[#allocation4 + $0x1a8] sm:$0xff]
    %v1444 = vld [vmem:[%s5] sm:$0xff]
    %1446 = vset.pattern.permute.xlu0 0
    %1447 = vperm.xlu0 %1446, %v1444
    %v1448 = vpop.permute.xlu0 %1447
    %v1451 = vunpack.c.l.b16 %v1389
    %v1452 = vunpack.c.h.b16 %v1389
    %v1453 = vpack.c.b16 %v1451, %v1451
    %v1454 = vpack.c.b16 %v1452, %v1452
    %v1457 = vsel %vm764, %v1454, 0
    %1459 = vmatprep.subr.bf16.mxu0 %v1391
    %1460 = vmatpush1.bf16.msra.mxu0 %v1390
    %1461 = vmatprep.subr.bf16.mxu0 %v1397
    %1462 = vmatpush1.bf16.msra.mxu0 %v1396
    %1463 = vmatprep.subr.bf16.mxu0 %v1403
    %1464 = vmatpush1.bf16.msra.mxu0 %v1402
    %1465 = vmatprep.subr.bf16.mxu0 %v1409
    %1466 = vmatpush1.bf16.msra.mxu0 %v1408
    %1467 = vmatprep.subr.bf16.mxu0 %v1415
    %1468 = vmatpush1.bf16.msra.mxu0 %v1414
    %1469 = vmatprep.subr.bf16.mxu0 %v1421
    %1470 = vmatpush1.bf16.msra.mxu0 %v1420
    %1471 = vmatprep.subr.bf16.mxu0 %v1427
    %1472 = vmatpush1.bf16.msra.mxu0 %v1426
    %1473 = vmatprep.subr.bf16.mxu0 %v1433
    %1474 = vmatpush1.bf16.msra.mxu0 %v1432
    %1475 = vmatprep.subr.bf16.mxu0 %v1439
    %1476 = vmatpush1.bf16.msra.mxu0 %v1438
    %1477 = vmatprep.subr.bf16.mxu0 0
    %1478 = vmatpush1.bf16.msra.mxu0 0
    %1479 = vmatprep.subr.bf16.mxu0 0
    %1480 = vmatpush1.bf16.msra.mxu0 0
    %1481 = vmatprep.subr.bf16.mxu0 0
    %1482 = vmatpush1.bf16.msra.mxu0 0
    %1483 = vmatprep.subr.bf16.mxu0 0
    %1484 = vmatpush1.bf16.msra.mxu0 0
    %1485 = vmatprep.subr.bf16.mxu0 0
    %1486 = vmatpush1.bf16.msra.mxu0 0
    %1487 = vmatprep.subr.bf16.mxu0 0
    %1488 = vmatpush1.bf16.msra.mxu0 0
    %1489 = vmatprep.subr.bf16.mxu0 0
    %1490 = vmatpush1.bf16.msra.mxu0 0
    %1491 = vmatprep.mubr.bf16.mxu0 %v1457
    %1492 = vmatmul.mubr.bf16.gmra.mrb[0].mxu0 %v1453
    %v1493 = vpop.f32.mrb[0].mxu0
    %v1494 = vadd.f32 %v1448, %v1493
    %v1495 = vpop.f32.mrb[0].mxu0
    %v1496 = vadd.f32 %v1448, %v1495
    %v1497 = vpop.f32.mrb[0].mxu0
    %v1498 = vpop.f32.mrb[0].mxu0
    %1499 = vdwg.mxu0
    %1500 = vmatprep.subr.bf16.mxu0 %v1393
    %1501 = vmatpush1.bf16.msra.mxu0 %v1392
    %1502 = vmatprep.subr.bf16.mxu0 %v1399
    %1503 = vmatpush1.bf16.msra.mxu0 %v1398
    %1504 = vmatprep.subr.bf16.mxu0 %v1405
    %1505 = vmatpush1.bf16.msra.mxu0 %v1404
    %1506 = vmatprep.subr.bf16.mxu0 %v1411
    %1507 = vmatpush1.bf16.msra.mxu0 %v1410
    %1508 = vmatprep.subr.bf16.mxu0 %v1417
    %1509 = vmatpush1.bf16.msra.mxu0 %v1416
    %1510 = vmatprep.subr.bf16.mxu0 %v1423
    %1511 = vmatpush1.bf16.msra.mxu0 %v1422
    %1512 = vmatprep.subr.bf16.mxu0 %v1429
    %1513 = vmatpush1.bf16.msra.mxu0 %v1428
    %1514 = vmatprep.subr.bf16.mxu0 %v1435
    %1515 = vmatpush1.bf16.msra.mxu0 %v1434
    %1516 = vmatprep.subr.bf16.mxu0 %v1441
    %1517 = vmatpush1.bf16.msra.mxu0 %v1440
    %1518 = vmatprep.subr.bf16.mxu0 0
    %1519 = vmatpush1.bf16.msra.mxu0 0
    %1520 = vmatprep.subr.bf16.mxu0 0
    %1521 = vmatpush1.bf16.msra.mxu0 0
    %1522 = vmatprep.subr.bf16.mxu0 0
    %1523 = vmatpush1.bf16.msra.mxu0 0
    %1524 = vmatprep.subr.bf16.mxu0 0
    %1525 = vmatpush1.bf16.msra.mxu0 0
    %1526 = vmatprep.subr.bf16.mxu0 0
    %1527 = vmatpush1.bf16.msra.mxu0 0
    %1528 = vmatprep.subr.bf16.mxu0 0
    %1529 = vmatpush1.bf16.msra.mxu0 0
    %1530 = vmatprep.subr.bf16.mxu0 0
    %1531 = vmatpush1.bf16.msra.mxu0 0
    %1532 = vmatprep.mubr.bf16.mxu0 %v1457
    %1533 = vmatmul.mubr.bf16.gmra.mrb[0].mxu0 %v1453
    %v1534 = vpop.f32.mrb[0].mxu0
    %v1535 = vadd.f32 %v1448, %v1534
    %v1536 = vpop.f32.mrb[0].mxu0
    %v1537 = vadd.f32 %v1448, %v1536
    %v1538 = vpop.f32.mrb[0].mxu0
    %v1539 = vpop.f32.mrb[0].mxu0
    %1540 = vdwg.mxu0
    %1541 = vmatprep.subr.bf16.mxu0 %v1395
    %1542 = vmatpush1.bf16.msra.mxu0 %v1394
    %1543 = vmatprep.subr.bf16.mxu0 %v1401
    %1544 = vmatpush1.bf16.msra.mxu0 %v1400
    %1545 = vmatprep.subr.bf16.mxu0 %v1407
    %1546 = vmatpush1.bf16.msra.mxu0 %v1406
    %1547 = vmatprep.subr.bf16.mxu0 %v1413
    %1548 = vmatpush1.bf16.msra.mxu0 %v1412
    %1549 = vmatprep.subr.bf16.mxu0 %v1419
    %1550 = vmatpush1.bf16.msra.mxu0 %v1418
    %1551 = vmatprep.subr.bf16.mxu0 %v1425
    %1552 = vmatpush1.bf16.msra.mxu0 %v1424
    %1553 = vmatprep.subr.bf16.mxu0 %v1431
    %1554 = vmatpush1.bf16.msra.mxu0 %v1430
    %1555 = vmatprep.subr.bf16.mxu0 %v1437
    %1556 = vmatpush1.bf16.msra.mxu0 %v1436
    %1557 = vmatprep.subr.bf16.mxu0 %v1443
    %1558 = vmatpush1.bf16.msra.mxu0 %v1442
    %1559 = vmatprep.subr.bf16.mxu0 0
    %1560 = vmatpush1.bf16.msra.mxu0 0
    %1561 = vmatprep.subr.bf16.mxu0 0
    %1562 = vmatpush1.bf16.msra.mxu0 0
    %1563 = vmatprep.subr.bf16.mxu0 0
    %1564 = vmatpush1.bf16.msra.mxu0 0
    %1565 = vmatprep.subr.bf16.mxu0 0
    %1566 = vmatpush1.bf16.msra.mxu0 0
    %1567 = vmatprep.subr.bf16.mxu0 0
    %1568 = vmatpush1.bf16.msra.mxu0 0
    %1569 = vmatprep.subr.bf16.mxu0 0
    %1570 = vmatpush1.bf16.msra.mxu0 0
    %1571 = vmatprep.subr.bf16.mxu0 0
    %1572 = vmatpush1.bf16.msra.mxu0 0
    %1573 = vmatprep.mubr.bf16.mxu0 %v1457
    %1574 = vmatmul.mubr.bf16.gmra.mrb[0].mxu0 %v1453
    %v1575 = vpop.f32.mrb[0].mxu0
    %v1576 = vadd.f32 %v1448, %v1575
    %v1577 = vpop.f32.mrb[0].mxu0
    %v1578 = vadd.f32 %v1448, %v1577
    %v1579 = vpop.f32.mrb[0].mxu0
    %v1580 = vpop.f32.mrb[0].mxu0
    %1581 = vdwg.mxu0
    %v1582 = vmul.f32 %v1494, 0.1
    %v1583 = vmul.f32 %v1496, 0.1
    %v1584 = vmul.f32 %v1535, 0.1
    %v1585 = vmul.f32 %v1537, 0.1
    %v1586 = vmul.f32 %v1576, 0.1
    %v1587 = vmul.f32 %v1578, 0.1
    %v1588 = vmax.f32 %v1494, %v1582
    %v1589 = vmax.f32 %v1496, %v1583
    %v1590 = vmax.f32 %v1535, %v1584
    %v1591 = vmax.f32 %v1537, %v1585
    %v1592 = vmax.f32 %v1576, %v1586
    %v1593 = vmax.f32 %v1578, %v1587
    %1594 = vst [vmem:[#allocation8] sm:$0xff] %v1588
    %1595 = vst [vmem:[#allocation8 + $0x8] sm:$0xff] %v1589
    %1596 = vst [vmem:[#allocation8 + $0x10] sm:$0xff] %v1590
    %s1597 = scalar_lea.vmem [#allocation8], 24
    %1598 = vst [vmem:[%s1597] sm:$0xff] %v1591
    %1599 = vst [vmem:[%s1597 + $0x8] sm:$0xff] %v1592
    %1600 = vst [vmem:[%s1597 + $0x10] sm:$0xff] %v1593
    // Predicated region
    $region30: #{tpu_custom_call.1} parent=1 // pred_check
      _
    $region31: #{tpu_custom_call.1} parent=1 // pred_check_branch
      %1602 = sbr.rel (0) target = $region33
    $region32: #{tpu_custom_call.1} parent=1 // pred_region
      %s1604 = ssub.s32 768, 768
      %1605 = vsyncadd [#allocation7], %s1604
      %s1606 = sshll.u32 [#allocation8], 4
      %s1607 = int_to_ptr.vmem [resolvable:$true] %s1606
      %1612 = dma.vmem_to_hbm [thread:$0]  %s1607, 768, %s6, [#allocation7], 384, 384, 24
    $region33: #{tpu_custom_call.1} parent=1 // pred_fallthru
      _
    // Predicated region
    $region34: #{tpu_custom_call.1} parent=1 // pred_check
      _
    $region35: #{tpu_custom_call.1} parent=1 // pred_check_branch
      %1614 = sbr.rel (0) target = $region37
    $region36: #{tpu_custom_call.1} parent=1 // pred_region
      %1615 = dma.done [#allocation7], 768
    $region37: #{tpu_custom_call.1} parent=1 // pred_fallthru
      _
    %1616 = vsyncpa [#allocation6], 1
    %1617 = vsyncpa [#allocation7], 1

</llo_original>
